<compile_context>
chip_gen: v5e
topology: v5e:2x2
jax: 0.10.0
libtpu: 0.0.40
codegen_flags: <defaults>
</compile_context>

<pallas_src>
import functools

import jax
import jax.numpy as jnp
from jax.experimental import pallas as pl
from jax.experimental.pallas import tpu as pltpu

IN_DIM = 28 * 28   # 784
H1 = 256
H2 = 128
DEFAULT_BATCH_TILE = 512   # target rows per grid step (tunable)


def autoencoder_kernel(x_ref,
                       w1_ref, b1_ref,
                       w2_ref, b2_ref,
                       w3_ref, b3_ref,
                       w4_ref, b4_ref,
                       o_ref):
    # All four matmuls + sigmoids fused in one kernel body; weights stay
    # resident in VMEM, one x/out tile streamed per grid step.
    cdt = w1_ref.dtype  # matmul-operand dtype (f32, or bf16 on the fast path)

    def layer(h, w_ref, b_ref):
        z = jnp.dot(h.astype(cdt), w_ref[...],
                    preferred_element_type=jnp.float32) + b_ref[...]
        return jax.nn.sigmoid(z)   # exp on the EUP slot

    h = layer(x_ref[...], w1_ref, b1_ref)
    h = layer(h, w2_ref, b2_ref)
    h = layer(h, w3_ref, b3_ref)
    o_ref[...] = layer(h, w4_ref, b4_ref).astype(o_ref.dtype)


def _round_up(n, m):
    return ((n + m - 1) // m) * m


def _choose_tiling(batch, target):
    """Pick (tile, padded_batch).

    Goals: tile rows are a multiple of 8; avoid padding beyond the 8-row
    sublane boundary whenever possible; keep tiles >= 64 rows so the ~0.35us
    per-step overhead stays amortized; give the grid >= 2 steps for large
    batches so v7x can shard the 'parallel' batch axis across both TCs.
    """
    bp8 = _round_up(batch, 8)
    if bp8 <= min(target, 128):
        return bp8, bp8                      # small batch: one whole-batch tile
    # Cap so the grid has >= 2 steps (megacore on v7x), never below 64 rows.
    cap = max(64, min(target, bp8 // 2))
    best = 0
    t = 8
    while t <= cap:
        if bp8 % t == 0:
            best = t
        t += 8
    if best >= 64:
        return best, bp8                     # clean divisor tile, no extra pad
    # Awkward batch (only tiny divisors). Prefer a single whole-batch tile
    # (no padding) if it still fits comfortably; otherwise pad the tail to a
    # healthy tile (waste is a small fraction of a large batch).
    if bp8 <= 2 * target:
        return bp8, bp8
    tile = min(target, 256)
    return tile, _round_up(bp8, tile)


@functools.partial(jax.jit, static_argnames=("batch_tile", "use_bf16"))
def autoencoder_forward(x, params, *, batch_tile=DEFAULT_BATCH_TILE,
                        use_bf16=False):
    """x: (B, 784) float32 -> (B, 784) float32."""
    w1, b1, w2, b2, w3, b3, w4, b4 = params
    B = x.shape[0]

    tile, Bp = _choose_tiling(B, batch_tile)

    # Pad only when needed (at most the ragged tail up to the chosen tiling).
    x_in = x if Bp == B else jnp.pad(x, ((0, Bp - B), (0, 0)))

    # Optional fast path: bf16 matmul operands, f32 accumulation/bias/sigmoid.
    if use_bf16:
        w1, w2, w3, w4 = (w.astype(jnp.bfloat16) for w in (w1, w2, w3, w4))
    w_bytes = 2 if use_bf16 else 4

    def resident(shape):
        # Small constant-index block: fetched once, resident in VMEM, and
        # single-buffered (no point double-buffering something never refetched).
        return pl.BlockSpec(shape, lambda i: (0, 0),
                            pipeline_mode=pl.Buffered(1))

    # --- VMEM budget for this tile (double-buffered x/out, resident weights,
    # live intermediates), with 1.5x headroom for compiler scratch. ---
    io_vmem = 2 * 2 * tile * IN_DIM * 4                       # x + out, 2 bufs
    weight_vmem = (w_bytes * (IN_DIM * H1 + H1 * H2 + H2 * H1 + H1 * IN_DIM)
                   + 4 * (H1 + H2 + H1 + IN_DIM))
    interm_vmem = tile * (H1 + H2 + H1) * 4
    vmem_limit = int(max(32 << 20,
                         min(48 << 20,
                             (io_vmem + weight_vmem + interm_vmem) * 3 // 2)))

    mm_flops_per_row = 2 * (IN_DIM * H1 + H1 * H2 + H2 * H1 + H1 * IN_DIM)
    weight_hbm_bytes = (w_bytes * (IN_DIM * H1 + H1 * H2 + H2 * H1 + H1 * IN_DIM)
                        + 4 * (H1 + H2 + H1 + IN_DIM))
    cost = pl.CostEstimate(
        flops=Bp * mm_flops_per_row,
        transcendentals=Bp * (H1 + H2 + H1 + IN_DIM),
        bytes_accessed=Bp * IN_DIM * 4 * 2 + weight_hbm_bytes,
    )

    out = pl.pallas_call(
        autoencoder_kernel,
        out_shape=jax.ShapeDtypeStruct((Bp, IN_DIM), jnp.float32),
        grid_spec=pltpu.PrefetchScalarGridSpec(
            num_scalar_prefetch=0,
            grid=(Bp // tile,),
            in_specs=[
                pl.BlockSpec((tile, IN_DIM), lambda i: (i, 0)),   # x tile
                resident((IN_DIM, H1)), resident((1, H1)),        # enc L1
                resident((H1, H2)),     resident((1, H2)),        # enc L2
                resident((H2, H1)),     resident((1, H1)),        # dec L1
                resident((H1, IN_DIM)), resident((1, IN_DIM)),    # dec L2
            ],
            out_specs=pl.BlockSpec((tile, IN_DIM), lambda i: (i, 0)),
        ),
        compiler_params=pltpu.CompilerParams(
            # Batch grid axis is independent -> shard across TCs on v7x.
            dimension_semantics=("parallel",),
            vmem_limit_bytes=vmem_limit,
        ),
        cost_estimate=cost,
    )(x_in, w1, b1, w2, b2, w3, b3, w4, b4)

    return out[:B] if Bp != B else out


def init_params(key):
    """Deterministic init mimicking PyTorch's default Linear init:
    U(-1/sqrt(fan_in), 1/sqrt(fan_in)). Weights stored as (in, out)."""
    dims = [(IN_DIM, H1), (H1, H2), (H2, H1), (H1, IN_DIM)]
    params = []
    for (fan_in, fan_out) in dims:
        key, kw, kb = jax.random.split(key, 3)
        bound = 1.0 / jnp.sqrt(jnp.float32(fan_in))
        w = jax.random.uniform(kw, (fan_in, fan_out), jnp.float32, -bound, bound)
        b = jax.random.uniform(kb, (1, fan_out), jnp.float32, -bound, bound)
        params += [w, b]
    return tuple(params)


def reference_forward(x, params):
    w1, b1, w2, b2, w3, b3, w4, b4 = params
    h = jax.nn.sigmoid(x @ w1 + b1)
    h = jax.nn.sigmoid(h @ w2 + b2)
    h = jax.nn.sigmoid(h @ w3 + b3)
    return jax.nn.sigmoid(h @ w4 + b4)


if __name__ == "__main__":
    key = jax.random.PRNGKey(0)
    key, kx, kx2 = jax.random.split(key, 3)
    params = init_params(key)

    # Small ragged batch (exercises sublane-rounding / whole-batch-tile path).
    B = 2
    x = jax.random.uniform(kx, (B, IN_DIM), jnp.float32)
    y = jax.block_until_ready(autoencoder_forward(x, params))
    y_ref = reference_forward(x, params)
    assert y.shape == (B, IN_DIM)
    assert jnp.allclose(y, y_ref, atol=1e-5, rtol=1e-5), "mismatch vs JAX reference (B=2)"

    # Evenly tiling batch (2 grid steps -> both TCs usable on v7x).
    B2 = 256
    x2 = jax.random.uniform(kx2, (B2, IN_DIM), jnp.float32)
    y2 = jax.block_until_ready(autoencoder_forward(x2, params))
    y2_ref = reference_forward(x2, params)
    assert jnp.allclose(y2, y2_ref, atol=1e-5, rtol=1e-5), "mismatch vs JAX reference (B=256)"

    # bf16-operand fast path (flagged numerics change; looser tolerance).
    y2_bf16 = jax.block_until_ready(autoencoder_forward(x2, params, use_bf16=True))
    assert float(jnp.max(jnp.abs(y2_bf16 - y2_ref))) < 3e-2, "bf16 path drifted too far"

    print("KERNEL_OK")
</pallas_src>

<mosaic_0001>
module attributes {stable_mosaic.version = 11 : i64} {
  func.func @autoencoder_kernel(%arg0: i32, %arg1: memref<8x784xf32, #tpu.memory_space<vmem>>, %arg2: memref<784x256xf32, #tpu.memory_space<vmem>>, %arg3: memref<1x256xf32, #tpu.memory_space<vmem>>, %arg4: memref<256x128xf32, #tpu.memory_space<vmem>>, %arg5: memref<1x128xf32, #tpu.memory_space<vmem>>, %arg6: memref<128x256xf32, #tpu.memory_space<vmem>>, %arg7: memref<1x256xf32, #tpu.memory_space<vmem>>, %arg8: memref<256x784xf32, #tpu.memory_space<vmem>>, %arg9: memref<1x784xf32, #tpu.memory_space<vmem>>, %arg10: memref<8x784xf32, #tpu.memory_space<vmem>>) attributes {dimension_semantics = [#tpu.dimension_semantics<parallel>], iteration_bounds = array<i64: 1>, scalar_prefetch = 0 : i64, scratch_operands = 0 : i64, tpu.core_type = #tpu.core_type<tc>, window_params = [{transform_indices = @transform_0, window_bounds = array<i64: 8, 784>}, {pipeline_mode = #tpu.pipeline_mode<synchronous>, transform_indices = @transform_1, window_bounds = array<i64: 784, 256>}, {pipeline_mode = #tpu.pipeline_mode<synchronous>, transform_indices = @transform_2, window_bounds = array<i64: 1, 256>}, {pipeline_mode = #tpu.pipeline_mode<synchronous>, transform_indices = @transform_3, window_bounds = array<i64: 256, 128>}, {pipeline_mode = #tpu.pipeline_mode<synchronous>, transform_indices = @transform_4, window_bounds = array<i64: 1, 128>}, {pipeline_mode = #tpu.pipeline_mode<synchronous>, transform_indices = @transform_5, window_bounds = array<i64: 128, 256>}, {pipeline_mode = #tpu.pipeline_mode<synchronous>, transform_indices = @transform_6, window_bounds = array<i64: 1, 256>}, {pipeline_mode = #tpu.pipeline_mode<synchronous>, transform_indices = @transform_7, window_bounds = array<i64: 256, 784>}, {pipeline_mode = #tpu.pipeline_mode<synchronous>, transform_indices = @transform_8, window_bounds = array<i64: 1, 784>}, {transform_indices = @transform_9, window_bounds = array<i64: 8, 784>}]} {
    %c0 = arith.constant 0 : index
    %c0_0 = arith.constant 0 : index
    %0 = vector.load %arg1[%c0, %c0_0] : memref<8x784xf32, #tpu.memory_space<vmem>>, vector<8x784xf32>
    %c0_1 = arith.constant 0 : index
    %c0_2 = arith.constant 0 : index
    %1 = vector.load %arg2[%c0_1, %c0_2] : memref<784x256xf32, #tpu.memory_space<vmem>>, vector<784x256xf32>
    %cst = arith.constant dense<0.000000e+00> : vector<8x256xf32>
    %2 = tpu.matmul %0, %1, %cst {dimension_numbers = #tpu.dot_dimension_numbers<[1], [0], [0], [1], [0, 0, 1, 1], [], []>} : vector<8x784xf32>, vector<784x256xf32>, vector<8x256xf32> -> vector<8x256xf32>
    %c0_3 = arith.constant 0 : index
    %c0_4 = arith.constant 0 : index
    %3 = vector.load %arg3[%c0_3, %c0_4] : memref<1x256xf32, #tpu.memory_space<vmem>>, vector<1x256xf32>
    %4 = vector.broadcast %3 : vector<1x256xf32> to vector<8x256xf32>
    %5 = arith.addf %2, %4 : vector<8x256xf32>
    %6 = arith.negf %5 : vector<8x256xf32>
    %7 = math.exp %6 : vector<8x256xf32>
    %cst_5 = arith.constant 1.000000e+00 : f32
    %8 = vector.broadcast %cst_5 : f32 to vector<8x256xf32>
    %9 = arith.addf %8, %7 : vector<8x256xf32>
    %10 = arith.divf %8, %9 : vector<8x256xf32>
    %c0_6 = arith.constant 0 : index
    %c0_7 = arith.constant 0 : index
    %11 = vector.load %arg4[%c0_6, %c0_7] : memref<256x128xf32, #tpu.memory_space<vmem>>, vector<256x128xf32>
    %cst_8 = arith.constant dense<0.000000e+00> : vector<8x128xf32>
    %12 = tpu.matmul %10, %11, %cst_8 {dimension_numbers = #tpu.dot_dimension_numbers<[1], [0], [0], [1], [0, 0, 1, 1], [], []>} : vector<8x256xf32>, vector<256x128xf32>, vector<8x128xf32> -> vector<8x128xf32>
    %c0_9 = arith.constant 0 : index
    %c0_10 = arith.constant 0 : index
    %13 = vector.load %arg5[%c0_9, %c0_10] : memref<1x128xf32, #tpu.memory_space<vmem>>, vector<1x128xf32>
    %14 = vector.broadcast %13 : vector<1x128xf32> to vector<8x128xf32>
    %15 = arith.addf %12, %14 : vector<8x128xf32>
    %16 = arith.negf %15 : vector<8x128xf32>
    %17 = math.exp %16 : vector<8x128xf32>
    %cst_11 = arith.constant 1.000000e+00 : f32
    %18 = vector.broadcast %cst_11 : f32 to vector<8x128xf32>
    %19 = arith.addf %18, %17 : vector<8x128xf32>
    %20 = arith.divf %18, %19 : vector<8x128xf32>
    %c0_12 = arith.constant 0 : index
    %c0_13 = arith.constant 0 : index
    %21 = vector.load %arg6[%c0_12, %c0_13] : memref<128x256xf32, #tpu.memory_space<vmem>>, vector<128x256xf32>
    %cst_14 = arith.constant dense<0.000000e+00> : vector<8x256xf32>
    %22 = tpu.matmul %20, %21, %cst_14 {dimension_numbers = #tpu.dot_dimension_numbers<[1], [0], [0], [1], [0, 0, 1, 1], [], []>} : vector<8x128xf32>, vector<128x256xf32>, vector<8x256xf32> -> vector<8x256xf32>
    %c0_15 = arith.constant 0 : index
    %c0_16 = arith.constant 0 : index
    %23 = vector.load %arg7[%c0_15, %c0_16] : memref<1x256xf32, #tpu.memory_space<vmem>>, vector<1x256xf32>
    %24 = vector.broadcast %23 : vector<1x256xf32> to vector<8x256xf32>
    %25 = arith.addf %22, %24 : vector<8x256xf32>
    %26 = arith.negf %25 : vector<8x256xf32>
    %27 = math.exp %26 : vector<8x256xf32>
    %cst_17 = arith.constant 1.000000e+00 : f32
    %28 = vector.broadcast %cst_17 : f32 to vector<8x256xf32>
    %29 = arith.addf %28, %27 : vector<8x256xf32>
    %30 = arith.divf %28, %29 : vector<8x256xf32>
    %c0_18 = arith.constant 0 : index
    %c0_19 = arith.constant 0 : index
    %31 = vector.load %arg8[%c0_18, %c0_19] : memref<256x784xf32, #tpu.memory_space<vmem>>, vector<256x784xf32>
    %cst_20 = arith.constant dense<0.000000e+00> : vector<8x784xf32>
    %32 = tpu.matmul %30, %31, %cst_20 {dimension_numbers = #tpu.dot_dimension_numbers<[1], [0], [0], [1], [0, 0, 1, 1], [], []>} : vector<8x256xf32>, vector<256x784xf32>, vector<8x784xf32> -> vector<8x784xf32>
    %c0_21 = arith.constant 0 : index
    %c0_22 = arith.constant 0 : index
    %33 = vector.load %arg9[%c0_21, %c0_22] : memref<1x784xf32, #tpu.memory_space<vmem>>, vector<1x784xf32>
    %34 = vector.broadcast %33 : vector<1x784xf32> to vector<8x784xf32>
    %35 = arith.addf %32, %34 : vector<8x784xf32>
    %36 = arith.negf %35 : vector<8x784xf32>
    %37 = math.exp %36 : vector<8x784xf32>
    %cst_23 = arith.constant 1.000000e+00 : f32
    %38 = vector.broadcast %cst_23 : f32 to vector<8x784xf32>
    %39 = arith.addf %38, %37 : vector<8x784xf32>
    %40 = arith.divf %38, %39 : vector<8x784xf32>
    %c0_24 = arith.constant 0 : index
    %c0_25 = arith.constant 0 : index
    %41 = vector.load %arg10[%c0_24, %c0_25] : memref<8x784xf32, #tpu.memory_space<vmem>>, vector<8x784xf32>
    tpu.vector_store %arg10[%c0_24, %c0_25], %40 {strides = array<i32>} : memref<8x784xf32, #tpu.memory_space<vmem>>, vector<8x784xf32>,
    return
  }
  func.func @transform_0(%arg0: i32) -> (i32, i32) {
    %c0_i32 = arith.constant 0 : i32
    %c0_i32_0 = arith.constant 0 : i32
    return %arg0, %c0_i32 : i32, i32
  }
  func.func @transform_1(%arg0: i32) -> (i32, i32) {
    %c0_i32 = arith.constant 0 : i32
    %c0_i32_0 = arith.constant 0 : i32
    %c0_i32_1 = arith.constant 0 : i32
    return %c0_i32, %c0_i32_0 : i32, i32
  }
  func.func @transform_2(%arg0: i32) -> (i32, i32) {
    %c0_i32 = arith.constant 0 : i32
    %c0_i32_0 = arith.constant 0 : i32
    %c0_i32_1 = arith.constant 0 : i32
    return %c0_i32, %c0_i32_0 : i32, i32
  }
  func.func @transform_3(%arg0: i32) -> (i32, i32) {
    %c0_i32 = arith.constant 0 : i32
    %c0_i32_0 = arith.constant 0 : i32
    %c0_i32_1 = arith.constant 0 : i32
    return %c0_i32, %c0_i32_0 : i32, i32
  }
  func.func @transform_4(%arg0: i32) -> (i32, i32) {
    %c0_i32 = arith.constant 0 : i32
    %c0_i32_0 = arith.constant 0 : i32
    %c0_i32_1 = arith.constant 0 : i32
    return %c0_i32, %c0_i32_0 : i32, i32
  }
  func.func @transform_5(%arg0: i32) -> (i32, i32) {
    %c0_i32 = arith.constant 0 : i32
    %c0_i32_0 = arith.constant 0 : i32
    %c0_i32_1 = arith.constant 0 : i32
    return %c0_i32, %c0_i32_0 : i32, i32
  }
  func.func @transform_6(%arg0: i32) -> (i32, i32) {
    %c0_i32 = arith.constant 0 : i32
    %c0_i32_0 = arith.constant 0 : i32
    %c0_i32_1 = arith.constant 0 : i32
    return %c0_i32, %c0_i32_0 : i32, i32
  }
  func.func @transform_7(%arg0: i32) -> (i32, i32) {
    %c0_i32 = arith.constant 0 : i32
    %c0_i32_0 = arith.constant 0 : i32
    %c0_i32_1 = arith.constant 0 : i32
    return %c0_i32, %c0_i32_0 : i32, i32
  }
  func.func @transform_8(%arg0: i32) -> (i32, i32) {
    %c0_i32 = arith.constant 0 : i32
    %c0_i32_0 = arith.constant 0 : i32
    %c0_i32_1 = arith.constant 0 : i32
    return %c0_i32, %c0_i32_0 : i32, i32
  }
  func.func @transform_9(%arg0: i32) -> (i32, i32) {
    %c0_i32 = arith.constant 0 : i32
    %c0_i32_0 = arith.constant 0 : i32
    return %arg0, %c0_i32 : i32, i32
  }
}

</mosaic_0001>

<llo_original>
// kernel: autoencoder_forward.1
$region0: #{autoencoder_forward.1}
  #allocation0 [shape = 'u32[]', space=smem, size = 0x4, offset = 0x4, fixed_abs, tag = 'smem constant byte address 0x4 - core index']
  #allocation1 [shape = 'u32[72,128]{1,0:T(1,128)}', space=vmem, size = 0x9000, scoped, tag = 'internal scratch']
  %s0 = inlined_call_operand.vmem [shape: f32[8,784], index: 0, kind: input, shape index: {}]
  %s1 = inlined_call_operand.vmem [shape: f32[784,256], index: 1, kind: input, shape index: {}]
  %s2 = inlined_call_operand.vmem [shape: f32[1,256], index: 2, kind: input, shape index: {}]
  %s3 = inlined_call_operand.vmem [shape: f32[256,128], index: 3, kind: input, shape index: {}]
  %s4 = inlined_call_operand.vmem [shape: f32[1,128], index: 4, kind: input, shape index: {}]
  %s5 = inlined_call_operand.vmem [shape: f32[128,256], index: 5, kind: input, shape index: {}]
  %s6 = inlined_call_operand.vmem [shape: f32[1,256], index: 6, kind: input, shape index: {}]
  %s7 = inlined_call_operand.vmem [shape: f32[256,784], index: 7, kind: input, shape index: {}]
  %s8 = inlined_call_operand.vmem [shape: f32[1,784], index: 8, kind: input, shape index: {}]
  %s9 = inlined_call_operand.vmem [shape: f32[8,784], index: 9, kind: output, shape index: {}]
  %s10 = sld [smem:[#allocation0]]
  $region46: #{autoencoder_forward.1} parent=0
    _
  %s12 = ssub.s32 1, %s10
  %s13 = scalar_select 0, %s12, %s10
  // Predicated region
  $region2: #{autoencoder_forward.1} parent=0 // pred_check
    _
  $region3: #{autoencoder_forward.1} parent=0 // pred_check_branch
    %15 = sbr.rel (0) target = $region5
  $region4: #{autoencoder_forward.1} parent=0 // pred_region
    _
  $region5: #{autoencoder_forward.1} parent=0 // pred_fallthru
    _
  // Predicated region
  $region6: #{autoencoder_forward.1} parent=0 // pred_check
    _
  $region7: #{autoencoder_forward.1} parent=0 // pred_check_branch
    %17 = sbr.rel (0) target = $region9
  $region8: #{autoencoder_forward.1} parent=0 // pred_region
    _
  $region9: #{autoencoder_forward.1} parent=0 // pred_fallthru
    _
  // Predicated region
  $region10: #{autoencoder_forward.1} parent=0 // pred_check
    _
  $region11: #{autoencoder_forward.1} parent=0 // pred_check_branch
    %19 = sbr.rel (0) target = $region13
  $region12: #{autoencoder_forward.1} parent=0 // pred_region
    _
  $region13: #{autoencoder_forward.1} parent=0 // pred_fallthru
    _
  // Predicated region
  $region14: #{autoencoder_forward.1} parent=0 // pred_check
    _
  $region15: #{autoencoder_forward.1} parent=0 // pred_check_branch
    %21 = sbr.rel (0) target = $region17
  $region16: #{autoencoder_forward.1} parent=0 // pred_region
    _
  $region17: #{autoencoder_forward.1} parent=0 // pred_fallthru
    _
  // Predicated region
  $region18: #{autoencoder_forward.1} parent=0 // pred_check
    _
  $region19: #{autoencoder_forward.1} parent=0 // pred_check_branch
    %23 = sbr.rel (0) target = $region21
  $region20: #{autoencoder_forward.1} parent=0 // pred_region
    _
  $region21: #{autoencoder_forward.1} parent=0 // pred_fallthru
    _
  // Predicated region
  $region22: #{autoencoder_forward.1} parent=0 // pred_check
    _
  $region23: #{autoencoder_forward.1} parent=0 // pred_check_branch
    %25 = sbr.rel (0) target = $region25
  $region24: #{autoencoder_forward.1} parent=0 // pred_region
    _
  $region25: #{autoencoder_forward.1} parent=0 // pred_fallthru
    _
  // Predicated region
  $region26: #{autoencoder_forward.1} parent=0 // pred_check
    _
  $region27: #{autoencoder_forward.1} parent=0 // pred_check_branch
    %27 = sbr.rel (0) target = $region29
  $region28: #{autoencoder_forward.1} parent=0 // pred_region
    _
  $region29: #{autoencoder_forward.1} parent=0 // pred_fallthru
    _
  // Predicated region
  $region30: #{autoencoder_forward.1} parent=0 // pred_check
    _
  $region31: #{autoencoder_forward.1} parent=0 // pred_check_branch
    %29 = sbr.rel (0) target = $region33
  $region32: #{autoencoder_forward.1} parent=0 // pred_region
    _
  $region33: #{autoencoder_forward.1} parent=0 // pred_fallthru
    _
  // Predicated region
  $region34: #{autoencoder_forward.1} parent=0 // pred_check
    _
  $region35: #{autoencoder_forward.1} parent=0 // pred_check_branch
    %31 = sbr.rel (0) target = $region37
  $region36: #{autoencoder_forward.1} parent=0 // pred_region
    _
  $region37: #{autoencoder_forward.1} parent=0 // pred_fallthru
    _
  %v32 = vld [vmem:[%s0] sm:$0xff]
  %v33 = vld [vmem:[%s0 + $0x8] sm:$0xff]
  %v34 = vld [vmem:[%s0 + $0x10] sm:$0xff]
  %v35 = vld [vmem:[%s0 + $0x18] sm:$0xff]
  %v36 = vld [vmem:[%s0 + $0x20] sm:$0xff]
  %v37 = vld [vmem:[%s0 + $0x28] sm:$0xff]
  %v38 = vld [vmem:[%s0 + $0x30] sm:$0xff]
  %v39 = vld [vmem:[%s1] sm:$0xff]
  %v40 = vld [vmem:[%s1 + $0x8] sm:$0xff]
  %v41 = vld [vmem:[%s1 + $0x10] sm:$0xff]
  %v42 = vld [vmem:[%s1 + $0x18] sm:$0xff]
  %v43 = vld [vmem:[%s1 + $0x20] sm:$0xff]
  %v44 = vld [vmem:[%s1 + $0x28] sm:$0xff]
  %v45 = vld [vmem:[%s1 + $0x30] sm:$0xff]
  %v46 = vld [vmem:[%s1 + $0x38] sm:$0xff]
  %v47 = vld [vmem:[%s1 + $0x40] sm:$0xff]
  %v48 = vld [vmem:[%s1 + $0x48] sm:$0xff]
  %v49 = vld [vmem:[%s1 + $0x50] sm:$0xff]
  %v50 = vld [vmem:[%s1 + $0x58] sm:$0xff]
  %v51 = vld [vmem:[%s1 + $0x60] sm:$0xff]
  %v52 = vld [vmem:[%s1 + $0x68] sm:$0xff]
  %v53 = vld [vmem:[%s1 + $0x70] sm:$0xff]
  %v54 = vld [vmem:[%s1 + $0x78] sm:$0xff]
  %v55 = vld [vmem:[%s1 + $0x80] sm:$0xff]
  %v56 = vld [vmem:[%s1 + $0x88] sm:$0xff]
  %v57 = vld [vmem:[%s1 + $0x90] sm:$0xff]
  %v58 = vld [vmem:[%s1 + $0x98] sm:$0xff]
  %v59 = vld [vmem:[%s1 + $0xa0] sm:$0xff]
  %v60 = vld [vmem:[%s1 + $0xa8] sm:$0xff]
  %v61 = vld [vmem:[%s1 + $0xb0] sm:$0xff]
  %v62 = vld [vmem:[%s1 + $0xb8] sm:$0xff]
  %v63 = vld [vmem:[%s1 + $0xc0] sm:$0xff]
  %v64 = vld [vmem:[%s1 + $0xc8] sm:$0xff]
  %v65 = vld [vmem:[%s1 + $0xd0] sm:$0xff]
  %v66 = vld [vmem:[%s1 + $0xd8] sm:$0xff]
  %v67 = vld [vmem:[%s1 + $0xe0] sm:$0xff]
  %v68 = vld [vmem:[%s1 + $0xe8] sm:$0xff]
  %v69 = vld [vmem:[%s1 + $0xf0] sm:$0xff]
  %v70 = vld [vmem:[%s1 + $0xf8] sm:$0xff]
  %v71 = vld [vmem:[%s1 + $0x100] sm:$0xff]
  %v72 = vld [vmem:[%s1 + $0x108] sm:$0xff]
  %v73 = vld [vmem:[%s1 + $0x110] sm:$0xff]
  %v74 = vld [vmem:[%s1 + $0x118] sm:$0xff]
  %v75 = vld [vmem:[%s1 + $0x120] sm:$0xff]
  %v76 = vld [vmem:[%s1 + $0x128] sm:$0xff]
  %v77 = vld [vmem:[%s1 + $0x130] sm:$0xff]
  %v78 = vld [vmem:[%s1 + $0x138] sm:$0xff]
  %v79 = vld [vmem:[%s1 + $0x140] sm:$0xff]
  %v80 = vld [vmem:[%s1 + $0x148] sm:$0xff]
  %v81 = vld [vmem:[%s1 + $0x150] sm:$0xff]
  %v82 = vld [vmem:[%s1 + $0x158] sm:$0xff]
  %v83 = vld [vmem:[%s1 + $0x160] sm:$0xff]
  %v84 = vld [vmem:[%s1 + $0x168] sm:$0xff]
  %v85 = vld [vmem:[%s1 + $0x170] sm:$0xff]
  %v86 = vld [vmem:[%s1 + $0x178] sm:$0xff]
  %v87 = vld [vmem:[%s1 + $0x180] sm:$0xff]
  %v88 = vld [vmem:[%s1 + $0x188] sm:$0xff]
  %v89 = vld [vmem:[%s1 + $0x190] sm:$0xff]
  %v90 = vld [vmem:[%s1 + $0x198] sm:$0xff]
  %v91 = vld [vmem:[%s1 + $0x1a0] sm:$0xff]
  %v92 = vld [vmem:[%s1 + $0x1a8] sm:$0xff]
  %v93 = vld [vmem:[%s1 + $0x1b0] sm:$0xff]
  %v94 = vld [vmem:[%s1 + $0x1b8] sm:$0xff]
  %v95 = vld [vmem:[%s1 + $0x1c0] sm:$0xff]
  %v96 = vld [vmem:[%s1 + $0x1c8] sm:$0xff]
  %v97 = vld [vmem:[%s1 + $0x1d0] sm:$0xff]
  %v98 = vld [vmem:[%s1 + $0x1d8] sm:$0xff]
  %v99 = vld [vmem:[%s1 + $0x1e0] sm:$0xff]
  %v100 = vld [vmem:[%s1 + $0x1e8] sm:$0xff]
  %v101 = vld [vmem:[%s1 + $0x1f0] sm:$0xff]
  %v102 = vld [vmem:[%s1 + $0x1f8] sm:$0xff]
  %v103 = vld [vmem:[%s1 + $0x200] sm:$0xff]
  %v104 = vld [vmem:[%s1 + $0x208] sm:$0xff]
  %v105 = vld [vmem:[%s1 + $0x210] sm:$0xff]
  %v106 = vld [vmem:[%s1 + $0x218] sm:$0xff]
  %v107 = vld [vmem:[%s1 + $0x220] sm:$0xff]
  %v108 = vld [vmem:[%s1 + $0x228] sm:$0xff]
  %v109 = vld [vmem:[%s1 + $0x230] sm:$0xff]
  %v110 = vld [vmem:[%s1 + $0x238] sm:$0xff]
  %v111 = vld [vmem:[%s1 + $0x240] sm:$0xff]
  %v112 = vld [vmem:[%s1 + $0x248] sm:$0xff]
  %v113 = vld [vmem:[%s1 + $0x250] sm:$0xff]
  %v114 = vld [vmem:[%s1 + $0x258] sm:$0xff]
  %v115 = vld [vmem:[%s1 + $0x260] sm:$0xff]
  %v116 = vld [vmem:[%s1 + $0x268] sm:$0xff]
  %v117 = vld [vmem:[%s1 + $0x270] sm:$0xff]
  %v118 = vld [vmem:[%s1 + $0x278] sm:$0xff]
  %v119 = vld [vmem:[%s1 + $0x280] sm:$0xff]
  %v120 = vld [vmem:[%s1 + $0x288] sm:$0xff]
  %v121 = vld [vmem:[%s1 + $0x290] sm:$0xff]
  %v122 = vld [vmem:[%s1 + $0x298] sm:$0xff]
  %v123 = vld [vmem:[%s1 + $0x2a0] sm:$0xff]
  %v124 = vld [vmem:[%s1 + $0x2a8] sm:$0xff]
  %v125 = vld [vmem:[%s1 + $0x2b0] sm:$0xff]
  %v126 = vld [vmem:[%s1 + $0x2b8] sm:$0xff]
  %v127 = vld [vmem:[%s1 + $0x2c0] sm:$0xff]
  %v128 = vld [vmem:[%s1 + $0x2c8] sm:$0xff]
  %v129 = vld [vmem:[%s1 + $0x2d0] sm:$0xff]
  %v130 = vld [vmem:[%s1 + $0x2d8] sm:$0xff]
  %v131 = vld [vmem:[%s1 + $0x2e0] sm:$0xff]
  %v132 = vld [vmem:[%s1 + $0x2e8] sm:$0xff]
  %v133 = vld [vmem:[%s1 + $0x2f0] sm:$0xff]
  %v134 = vld [vmem:[%s1 + $0x2f8] sm:$0xff]
  %v135 = vld [vmem:[%s1 + $0x300] sm:$0xff]
  %v136 = vld [vmem:[%s1 + $0x308] sm:$0xff]
  %v137 = vld [vmem:[%s1 + $0x310] sm:$0xff]
  %v138 = vld [vmem:[%s1 + $0x318] sm:$0xff]
  %v139 = vld [vmem:[%s1 + $0x320] sm:$0xff]
  %v140 = vld [vmem:[%s1 + $0x328] sm:$0xff]
  %v141 = vld [vmem:[%s1 + $0x330] sm:$0xff]
  %v142 = vld [vmem:[%s1 + $0x338] sm:$0xff]
  %v143 = vld [vmem:[%s1 + $0x340] sm:$0xff]
  %v144 = vld [vmem:[%s1 + $0x348] sm:$0xff]
  %v145 = vld [vmem:[%s1 + $0x350] sm:$0xff]
  %v146 = vld [vmem:[%s1 + $0x358] sm:$0xff]
  %v147 = vld [vmem:[%s1 + $0x360] sm:$0xff]
  %v148 = vld [vmem:[%s1 + $0x368] sm:$0xff]
  %v149 = vld [vmem:[%s1 + $0x370] sm:$0xff]
  %v150 = vld [vmem:[%s1 + $0x378] sm:$0xff]
  %v151 = vld [vmem:[%s1 + $0x380] sm:$0xff]
  %v152 = vld [vmem:[%s1 + $0x388] sm:$0xff]
  %v153 = vld [vmem:[%s1 + $0x390] sm:$0xff]
  %v154 = vld [vmem:[%s1 + $0x398] sm:$0xff]
  %v155 = vld [vmem:[%s1 + $0x3a0] sm:$0xff]
  %v156 = vld [vmem:[%s1 + $0x3a8] sm:$0xff]
  %v157 = vld [vmem:[%s1 + $0x3b0] sm:$0xff]
  %v158 = vld [vmem:[%s1 + $0x3b8] sm:$0xff]
  %v159 = vld [vmem:[%s1 + $0x3c0] sm:$0xff]
  %v160 = vld [vmem:[%s1 + $0x3c8] sm:$0xff]
  %v161 = vld [vmem:[%s1 + $0x3d0] sm:$0xff]
  %v162 = vld [vmem:[%s1 + $0x3d8] sm:$0xff]
  %v163 = vld [vmem:[%s1 + $0x3e0] sm:$0xff]
  %v164 = vld [vmem:[%s1 + $0x3e8] sm:$0xff]
  %v165 = vld [vmem:[%s1 + $0x3f0] sm:$0xff]
  %v166 = vld [vmem:[%s1 + $0x3f8] sm:$0xff]
  %v167 = vld [vmem:[%s1 + $0x400] sm:$0xff]
  %v168 = vld [vmem:[%s1 + $0x408] sm:$0xff]
  %v169 = vld [vmem:[%s1 + $0x410] sm:$0xff]
  %v170 = vld [vmem:[%s1 + $0x418] sm:$0xff]
  %v171 = vld [vmem:[%s1 + $0x420] sm:$0xff]
  %v172 = vld [vmem:[%s1 + $0x428] sm:$0xff]
  %v173 = vld [vmem:[%s1 + $0x430] sm:$0xff]
  %v174 = vld [vmem:[%s1 + $0x438] sm:$0xff]
  %v175 = vld [vmem:[%s1 + $0x440] sm:$0xff]
  %v176 = vld [vmem:[%s1 + $0x448] sm:$0xff]
  %v177 = vld [vmem:[%s1 + $0x450] sm:$0xff]
  %v178 = vld [vmem:[%s1 + $0x458] sm:$0xff]
  %v179 = vld [vmem:[%s1 + $0x460] sm:$0xff]
  %v180 = vld [vmem:[%s1 + $0x468] sm:$0xff]
  %v181 = vld [vmem:[%s1 + $0x470] sm:$0xff]
  %v182 = vld [vmem:[%s1 + $0x478] sm:$0xff]
  %v183 = vld [vmem:[%s1 + $0x480] sm:$0xff]
  %v184 = vld [vmem:[%s1 + $0x488] sm:$0xff]
  %v185 = vld [vmem:[%s1 + $0x490] sm:$0xff]
  %v186 = vld [vmem:[%s1 + $0x498] sm:$0xff]
  %v187 = vld [vmem:[%s1 + $0x4a0] sm:$0xff]
  %v188 = vld [vmem:[%s1 + $0x4a8] sm:$0xff]
  %v189 = vld [vmem:[%s1 + $0x4b0] sm:$0xff]
  %v190 = vld [vmem:[%s1 + $0x4b8] sm:$0xff]
  %v191 = vld [vmem:[%s1 + $0x4c0] sm:$0xff]
  %v192 = vld [vmem:[%s1 + $0x4c8] sm:$0xff]
  %v193 = vld [vmem:[%s1 + $0x4d0] sm:$0xff]
  %v194 = vld [vmem:[%s1 + $0x4d8] sm:$0xff]
  %v195 = vld [vmem:[%s1 + $0x4e0] sm:$0xff]
  %v196 = vld [vmem:[%s1 + $0x4e8] sm:$0xff]
  %v197 = vld [vmem:[%s1 + $0x4f0] sm:$0xff]
  %v198 = vld [vmem:[%s1 + $0x4f8] sm:$0xff]
  %v199 = vld [vmem:[%s1 + $0x500] sm:$0xff]
  %v200 = vld [vmem:[%s1 + $0x508] sm:$0xff]
  %v201 = vld [vmem:[%s1 + $0x510] sm:$0xff]
  %v202 = vld [vmem:[%s1 + $0x518] sm:$0xff]
  %v203 = vld [vmem:[%s1 + $0x520] sm:$0xff]
  %v204 = vld [vmem:[%s1 + $0x528] sm:$0xff]
  %v205 = vld [vmem:[%s1 + $0x530] sm:$0xff]
  %v206 = vld [vmem:[%s1 + $0x538] sm:$0xff]
  %v207 = vld [vmem:[%s1 + $0x540] sm:$0xff]
  %v208 = vld [vmem:[%s1 + $0x548] sm:$0xff]
  %v209 = vld [vmem:[%s1 + $0x550] sm:$0xff]
  %v210 = vld [vmem:[%s1 + $0x558] sm:$0xff]
  %v211 = vld [vmem:[%s1 + $0x560] sm:$0xff]
  %v212 = vld [vmem:[%s1 + $0x568] sm:$0xff]
  %v213 = vld [vmem:[%s1 + $0x570] sm:$0xff]
  %v214 = vld [vmem:[%s1 + $0x578] sm:$0xff]
  %v215 = vld [vmem:[%s1 + $0x580] sm:$0xff]
  %v216 = vld [vmem:[%s1 + $0x588] sm:$0xff]
  %v217 = vld [vmem:[%s1 + $0x590] sm:$0xff]
  %v218 = vld [vmem:[%s1 + $0x598] sm:$0xff]
  %v219 = vld [vmem:[%s1 + $0x5a0] sm:$0xff]
  %v220 = vld [vmem:[%s1 + $0x5a8] sm:$0xff]
  %v221 = vld [vmem:[%s1 + $0x5b0] sm:$0xff]
  %v222 = vld [vmem:[%s1 + $0x5b8] sm:$0xff]
  %v223 = vld [vmem:[%s1 + $0x5c0] sm:$0xff]
  %v224 = vld [vmem:[%s1 + $0x5c8] sm:$0xff]
  %v225 = vld [vmem:[%s1 + $0x5d0] sm:$0xff]
  %v226 = vld [vmem:[%s1 + $0x5d8] sm:$0xff]
  %v227 = vld [vmem:[%s1 + $0x5e0] sm:$0xff]
  %v228 = vld [vmem:[%s1 + $0x5e8] sm:$0xff]
  %v229 = vld [vmem:[%s1 + $0x5f0] sm:$0xff]
  %v230 = vld [vmem:[%s1 + $0x5f8] sm:$0xff]
  %v231 = vld [vmem:[%s1 + $0x600] sm:$0xff]
  %v232 = vld [vmem:[%s1 + $0x608] sm:$0xff]
  %v233 = vld [vmem:[%s1 + $0x610] sm:$0xff]
  %v234 = vld [vmem:[%s1 + $0x618] sm:$0xff]
  %v235 = vld [vmem:[%s2] sm:$0x3]
  %v237 = vperm.slane %v235, 0
  %v238 = vperm.slane %v235, 1
  %vm241 = vcmask 130048
  %v243 = vsel %vm241, %v38, 0
  %245 = vmatpush.msra.mxu0 %v69
  %246 = vmatpush.msra.mxu0 %v67
  %247 = vmatpush.msra.mxu0 %v65
  %248 = vmatpush.msra.mxu0 %v63
  %249 = vmatpush.msra.mxu0 %v61
  %250 = vmatpush.msra.mxu0 %v59
  %251 = vmatpush.msra.mxu0 %v57
  %252 = vmatpush.msra.mxu0 %v55
  %253 = vmatpush.msra.mxu0 %v53
  %254 = vmatpush.msra.mxu0 %v51
  %255 = vmatpush.msra.mxu0 %v49
  %256 = vmatpush.msra.mxu0 %v47
  %257 = vmatpush.msra.mxu0 %v45
  %258 = vmatpush.msra.mxu0 %v43
  %259 = vmatpush.msra.mxu0 %v41
  %260 = vmatpush.msra.mxu0 %v39
  %261 = vmatmul.f32.gmra.mxu0 %v32
  %v262 = vpop.f32.mrf.mxu0
  %v263 = vadd.f32 %v237, %v262
  %264 = vdwg.mxu0
  %265 = vmatpush.msra.mxu0 %v101
  %266 = vmatpush.msra.mxu0 %v99
  %267 = vmatpush.msra.mxu0 %v97
  %268 = vmatpush.msra.mxu0 %v95
  %269 = vmatpush.msra.mxu0 %v93
  %270 = vmatpush.msra.mxu0 %v91
  %271 = vmatpush.msra.mxu0 %v89
  %272 = vmatpush.msra.mxu0 %v87
  %273 = vmatpush.msra.mxu0 %v85
  %274 = vmatpush.msra.mxu0 %v83
  %275 = vmatpush.msra.mxu0 %v81
  %276 = vmatpush.msra.mxu0 %v79
  %277 = vmatpush.msra.mxu0 %v77
  %278 = vmatpush.msra.mxu0 %v75
  %279 = vmatpush.msra.mxu0 %v73
  %280 = vmatpush.msra.mxu0 %v71
  %281 = vmatmul.f32.gmra.mxu0 %v33
  %v282 = vpop.f32.mrf.mxu0
  %v283 = vadd.f32 %v263, %v282
  %284 = vdwg.mxu0
  %285 = vmatpush.msra.mxu0 %v133
  %286 = vmatpush.msra.mxu0 %v131
  %287 = vmatpush.msra.mxu0 %v129
  %288 = vmatpush.msra.mxu0 %v127
  %289 = vmatpush.msra.mxu0 %v125
  %290 = vmatpush.msra.mxu0 %v123
  %291 = vmatpush.msra.mxu0 %v121
  %292 = vmatpush.msra.mxu0 %v119
  %293 = vmatpush.msra.mxu0 %v117
  %294 = vmatpush.msra.mxu0 %v115
  %295 = vmatpush.msra.mxu0 %v113
  %296 = vmatpush.msra.mxu0 %v111
  %297 = vmatpush.msra.mxu0 %v109
  %298 = vmatpush.msra.mxu0 %v107
  %299 = vmatpush.msra.mxu0 %v105
  %300 = vmatpush.msra.mxu0 %v103
  %301 = vmatmul.f32.gmra.mxu0 %v34
  %v302 = vpop.f32.mrf.mxu0
  %v303 = vadd.f32 %v283, %v302
  %304 = vdwg.mxu0
  %305 = vmatpush.msra.mxu0 %v165
  %306 = vmatpush.msra.mxu0 %v163
  %307 = vmatpush.msra.mxu0 %v161
  %308 = vmatpush.msra.mxu0 %v159
  %309 = vmatpush.msra.mxu0 %v157
  %310 = vmatpush.msra.mxu0 %v155
  %311 = vmatpush.msra.mxu0 %v153
  %312 = vmatpush.msra.mxu0 %v151
  %313 = vmatpush.msra.mxu0 %v149
  %314 = vmatpush.msra.mxu0 %v147
  %315 = vmatpush.msra.mxu0 %v145
  %316 = vmatpush.msra.mxu0 %v143
  %317 = vmatpush.msra.mxu0 %v141
  %318 = vmatpush.msra.mxu0 %v139
  %319 = vmatpush.msra.mxu0 %v137
  %320 = vmatpush.msra.mxu0 %v135
  %321 = vmatmul.f32.gmra.mxu0 %v35
  %v322 = vpop.f32.mrf.mxu0
  %v323 = vadd.f32 %v303, %v322
  %324 = vdwg.mxu0
  %325 = vmatpush.msra.mxu0 %v197
  %326 = vmatpush.msra.mxu0 %v195
  %327 = vmatpush.msra.mxu0 %v193
  %328 = vmatpush.msra.mxu0 %v191
  %329 = vmatpush.msra.mxu0 %v189
  %330 = vmatpush.msra.mxu0 %v187
  %331 = vmatpush.msra.mxu0 %v185
  %332 = vmatpush.msra.mxu0 %v183
  %333 = vmatpush.msra.mxu0 %v181
  %334 = vmatpush.msra.mxu0 %v179
  %335 = vmatpush.msra.mxu0 %v177
  %336 = vmatpush.msra.mxu0 %v175
  %337 = vmatpush.msra.mxu0 %v173
  %338 = vmatpush.msra.mxu0 %v171
  %339 = vmatpush.msra.mxu0 %v169
  %340 = vmatpush.msra.mxu0 %v167
  %341 = vmatmul.f32.gmra.mxu0 %v36
  %v342 = vpop.f32.mrf.mxu0
  %v343 = vadd.f32 %v323, %v342
  %344 = vdwg.mxu0
  %345 = vmatpush.msra.mxu0 %v229
  %346 = vmatpush.msra.mxu0 %v227
  %347 = vmatpush.msra.mxu0 %v225
  %348 = vmatpush.msra.mxu0 %v223
  %349 = vmatpush.msra.mxu0 %v221
  %350 = vmatpush.msra.mxu0 %v219
  %351 = vmatpush.msra.mxu0 %v217
  %352 = vmatpush.msra.mxu0 %v215
  %353 = vmatpush.msra.mxu0 %v213
  %354 = vmatpush.msra.mxu0 %v211
  %355 = vmatpush.msra.mxu0 %v209
  %356 = vmatpush.msra.mxu0 %v207
  %357 = vmatpush.msra.mxu0 %v205
  %358 = vmatpush.msra.mxu0 %v203
  %359 = vmatpush.msra.mxu0 %v201
  %360 = vmatpush.msra.mxu0 %v199
  %361 = vmatmul.f32.gmra.mxu0 %v37
  %v362 = vpop.f32.mrf.mxu0
  %v363 = vadd.f32 %v343, %v362
  %364 = vdwg.mxu0
  %365 = vmatpush.msra.mxu0 0.0
  %366 = vmatpush.msra.mxu0 0.0
  %367 = vmatpush.msra.mxu0 0.0
  %368 = vmatpush.msra.mxu0 0.0
  %369 = vmatpush.msra.mxu0 0.0
  %370 = vmatpush.msra.mxu0 0.0
  %371 = vmatpush.msra.mxu0 0.0
  %372 = vmatpush.msra.mxu0 0.0
  %373 = vmatpush.msra.mxu0 0.0
  %374 = vmatpush.msra.mxu0 0.0
  %375 = vmatpush.msra.mxu0 0.0
  %376 = vmatpush.msra.mxu0 0.0
  %377 = vmatpush.msra.mxu0 0.0
  %378 = vmatpush.msra.mxu0 0.0
  %379 = vmatpush.msra.mxu0 %v233
  %380 = vmatpush.msra.mxu0 %v231
  %381 = vmatmul.f32.gmra.mxu0 %v243
  %v382 = vpop.f32.mrf.mxu0
  %v383 = vadd.f32 %v363, %v382
  %384 = vdwg.mxu0
  %385 = vmatpush.msra.mxu0 %v70
  %386 = vmatpush.msra.mxu0 %v68
  %387 = vmatpush.msra.mxu0 %v66
  %388 = vmatpush.msra.mxu0 %v64
  %389 = vmatpush.msra.mxu0 %v62
  %390 = vmatpush.msra.mxu0 %v60
  %391 = vmatpush.msra.mxu0 %v58
  %392 = vmatpush.msra.mxu0 %v56
  %393 = vmatpush.msra.mxu0 %v54
  %394 = vmatpush.msra.mxu0 %v52
  %395 = vmatpush.msra.mxu0 %v50
  %396 = vmatpush.msra.mxu0 %v48
  %397 = vmatpush.msra.mxu0 %v46
  %398 = vmatpush.msra.mxu0 %v44
  %399 = vmatpush.msra.mxu0 %v42
  %400 = vmatpush.msra.mxu0 %v40
  %401 = vmatmul.f32.gmra.mxu0 %v32
  %v402 = vpop.f32.mrf.mxu0
  %v403 = vadd.f32 %v238, %v402
  %404 = vdwg.mxu0
  %405 = vmatpush.msra.mxu0 %v102
  %406 = vmatpush.msra.mxu0 %v100
  %407 = vmatpush.msra.mxu0 %v98
  %408 = vmatpush.msra.mxu0 %v96
  %409 = vmatpush.msra.mxu0 %v94
  %410 = vmatpush.msra.mxu0 %v92
  %411 = vmatpush.msra.mxu0 %v90
  %412 = vmatpush.msra.mxu0 %v88
  %413 = vmatpush.msra.mxu0 %v86
  %414 = vmatpush.msra.mxu0 %v84
  %415 = vmatpush.msra.mxu0 %v82
  %416 = vmatpush.msra.mxu0 %v80
  %417 = vmatpush.msra.mxu0 %v78
  %418 = vmatpush.msra.mxu0 %v76
  %419 = vmatpush.msra.mxu0 %v74
  %420 = vmatpush.msra.mxu0 %v72
  %421 = vmatmul.f32.gmra.mxu0 %v33
  %v422 = vpop.f32.mrf.mxu0
  %v423 = vadd.f32 %v403, %v422
  %424 = vdwg.mxu0
  %425 = vmatpush.msra.mxu0 %v134
  %426 = vmatpush.msra.mxu0 %v132
  %427 = vmatpush.msra.mxu0 %v130
  %428 = vmatpush.msra.mxu0 %v128
  %429 = vmatpush.msra.mxu0 %v126
  %430 = vmatpush.msra.mxu0 %v124
  %431 = vmatpush.msra.mxu0 %v122
  %432 = vmatpush.msra.mxu0 %v120
  %433 = vmatpush.msra.mxu0 %v118
  %434 = vmatpush.msra.mxu0 %v116
  %435 = vmatpush.msra.mxu0 %v114
  %436 = vmatpush.msra.mxu0 %v112
  %437 = vmatpush.msra.mxu0 %v110
  %438 = vmatpush.msra.mxu0 %v108
  %439 = vmatpush.msra.mxu0 %v106
  %440 = vmatpush.msra.mxu0 %v104
  %441 = vmatmul.f32.gmra.mxu0 %v34
  %v442 = vpop.f32.mrf.mxu0
  %v443 = vadd.f32 %v423, %v442
  %444 = vdwg.mxu0
  %445 = vmatpush.msra.mxu0 %v166
  %446 = vmatpush.msra.mxu0 %v164
  %447 = vmatpush.msra.mxu0 %v162
  %448 = vmatpush.msra.mxu0 %v160
  %449 = vmatpush.msra.mxu0 %v158
  %450 = vmatpush.msra.mxu0 %v156
  %451 = vmatpush.msra.mxu0 %v154
  %452 = vmatpush.msra.mxu0 %v152
  %453 = vmatpush.msra.mxu0 %v150
  %454 = vmatpush.msra.mxu0 %v148
  %455 = vmatpush.msra.mxu0 %v146
  %456 = vmatpush.msra.mxu0 %v144
  %457 = vmatpush.msra.mxu0 %v142
  %458 = vmatpush.msra.mxu0 %v140
  %459 = vmatpush.msra.mxu0 %v138
  %460 = vmatpush.msra.mxu0 %v136
  %461 = vmatmul.f32.gmra.mxu0 %v35
  %v462 = vpop.f32.mrf.mxu0
  %v463 = vadd.f32 %v443, %v462
  %464 = vdwg.mxu0
  %465 = vmatpush.msra.mxu0 %v198
  %466 = vmatpush.msra.mxu0 %v196
  %467 = vmatpush.msra.mxu0 %v194
  %468 = vmatpush.msra.mxu0 %v192
  %469 = vmatpush.msra.mxu0 %v190
  %470 = vmatpush.msra.mxu0 %v188
  %471 = vmatpush.msra.mxu0 %v186
  %472 = vmatpush.msra.mxu0 %v184
  %473 = vmatpush.msra.mxu0 %v182
  %474 = vmatpush.msra.mxu0 %v180
  %475 = vmatpush.msra.mxu0 %v178
  %476 = vmatpush.msra.mxu0 %v176
  %477 = vmatpush.msra.mxu0 %v174
  %478 = vmatpush.msra.mxu0 %v172
  %479 = vmatpush.msra.mxu0 %v170
  %480 = vmatpush.msra.mxu0 %v168
  %481 = vmatmul.f32.gmra.mxu0 %v36
  %v482 = vpop.f32.mrf.mxu0
  %v483 = vadd.f32 %v463, %v482
  %484 = vdwg.mxu0
  %485 = vmatpush.msra.mxu0 %v230
  %486 = vmatpush.msra.mxu0 %v228
  %487 = vmatpush.msra.mxu0 %v226
  %488 = vmatpush.msra.mxu0 %v224
  %489 = vmatpush.msra.mxu0 %v222
  %490 = vmatpush.msra.mxu0 %v220
  %491 = vmatpush.msra.mxu0 %v218
  %492 = vmatpush.msra.mxu0 %v216
  %493 = vmatpush.msra.mxu0 %v214
  %494 = vmatpush.msra.mxu0 %v212
  %495 = vmatpush.msra.mxu0 %v210
  %496 = vmatpush.msra.mxu0 %v208
  %497 = vmatpush.msra.mxu0 %v206
  %498 = vmatpush.msra.mxu0 %v204
  %499 = vmatpush.msra.mxu0 %v202
  %500 = vmatpush.msra.mxu0 %v200
  %501 = vmatmul.f32.gmra.mxu0 %v37
  %v502 = vpop.f32.mrf.mxu0
  %v503 = vadd.f32 %v483, %v502
  %504 = vdwg.mxu0
  %505 = vmatpush.msra.mxu0 0.0
  %506 = vmatpush.msra.mxu0 0.0
  %507 = vmatpush.msra.mxu0 0.0
  %508 = vmatpush.msra.mxu0 0.0
  %509 = vmatpush.msra.mxu0 0.0
  %510 = vmatpush.msra.mxu0 0.0
  %511 = vmatpush.msra.mxu0 0.0
  %512 = vmatpush.msra.mxu0 0.0
  %513 = vmatpush.msra.mxu0 0.0
  %514 = vmatpush.msra.mxu0 0.0
  %515 = vmatpush.msra.mxu0 0.0
  %516 = vmatpush.msra.mxu0 0.0
  %517 = vmatpush.msra.mxu0 0.0
  %518 = vmatpush.msra.mxu0 0.0
  %519 = vmatpush.msra.mxu0 %v234
  %520 = vmatpush.msra.mxu0 %v232
  %521 = vmatmul.f32.gmra.mxu0 %v243
  %v522 = vpop.f32.mrf.mxu0
  %v523 = vadd.f32 %v503, %v522
  %524 = vdwg.mxu0
  %v525 = vxor.u32 %v383, 2147483648
  %v526 = vxor.u32 %v523, 2147483648
  %v527 = vmul.f32 %v525, 1.442695
  %v528 = vpow.pop %v527
  %v529 = vmul.f32 %v526, 1.442695
  %v530 = vpow.pop %v529
  %v531 = vadd.f32 %v528, 1.0
  %v532 = vadd.f32 %v530, 1.0
  %v533 = vrcp.pop %v531
  %v534 = vmul.f32 %v531, %v533
  %v535 = vsub.f32 1.0, %v534
  %v536 = vmul.f32 %v533, %v535
  %v537 = vadd.f32 %v533, %v536
  %vm538 = vweird.f32 %v531
  %vm539 = vweird.f32 %v533
  %vm540 = vmor %vm538, %vm539
  %v541 = vsel %vm540, %v533, %v537
  %v542 = vand.u32 2147483647, %v531
  %vm543 = vcmp.eq.f32.partialorder %v542, 8.507059e+37
  %v544 = vand.u32 %v531, 2147483648
  %v545 = vor.u32 1.1754944e-38, %v544
  %v546 = vsel %vm543, %v545, %v541
  %v547 = vmul.f32 1.0, %v546
  %v548 = vrcp.pop %v532
  %v549 = vmul.f32 %v532, %v548
  %v550 = vsub.f32 1.0, %v549
  %v551 = vmul.f32 %v548, %v550
  %v552 = vadd.f32 %v548, %v551
  %vm553 = vweird.f32 %v532
  %vm554 = vweird.f32 %v548
  %vm555 = vmor %vm553, %vm554
  %v556 = vsel %vm555, %v548, %v552
  %v557 = vand.u32 2147483647, %v532
  %vm558 = vcmp.eq.f32.partialorder %v557, 8.507059e+37
  %v559 = vand.u32 %v532, 2147483648
  %v560 = vor.u32 1.1754944e-38, %v559
  %v561 = vsel %vm558, %v560, %v556
  %v562 = vmul.f32 1.0, %v561
  %v563 = vld [vmem:[%s3] sm:$0xff]
  %v564 = vld [vmem:[%s3 + $0x8] sm:$0xff]
  %v565 = vld [vmem:[%s3 + $0x10] sm:$0xff]
  %v566 = vld [vmem:[%s3 + $0x18] sm:$0xff]
  %v567 = vld [vmem:[%s3 + $0x20] sm:$0xff]
  %v568 = vld [vmem:[%s3 + $0x28] sm:$0xff]
  %v569 = vld [vmem:[%s3 + $0x30] sm:$0xff]
  %v570 = vld [vmem:[%s3 + $0x38] sm:$0xff]
  %v571 = vld [vmem:[%s3 + $0x40] sm:$0xff]
  %v572 = vld [vmem:[%s3 + $0x48] sm:$0xff]
  %v573 = vld [vmem:[%s3 + $0x50] sm:$0xff]
  %v574 = vld [vmem:[%s3 + $0x58] sm:$0xff]
  %v575 = vld [vmem:[%s3 + $0x60] sm:$0xff]
  %v576 = vld [vmem:[%s3 + $0x68] sm:$0xff]
  %v577 = vld [vmem:[%s3 + $0x70] sm:$0xff]
  %v578 = vld [vmem:[%s3 + $0x78] sm:$0xff]
  %v579 = vld [vmem:[%s3 + $0x80] sm:$0xff]
  %v580 = vld [vmem:[%s3 + $0x88] sm:$0xff]
  %v581 = vld [vmem:[%s3 + $0x90] sm:$0xff]
  %v582 = vld [vmem:[%s3 + $0x98] sm:$0xff]
  %v583 = vld [vmem:[%s3 + $0xa0] sm:$0xff]
  %v584 = vld [vmem:[%s3 + $0xa8] sm:$0xff]
  %v585 = vld [vmem:[%s3 + $0xb0] sm:$0xff]
  %v586 = vld [vmem:[%s3 + $0xb8] sm:$0xff]
  %v587 = vld [vmem:[%s3 + $0xc0] sm:$0xff]
  %v588 = vld [vmem:[%s3 + $0xc8] sm:$0xff]
  %v589 = vld [vmem:[%s3 + $0xd0] sm:$0xff]
  %v590 = vld [vmem:[%s3 + $0xd8] sm:$0xff]
  %v591 = vld [vmem:[%s3 + $0xe0] sm:$0xff]
  %v592 = vld [vmem:[%s3 + $0xe8] sm:$0xff]
  %v593 = vld [vmem:[%s3 + $0xf0] sm:$0xff]
  %v594 = vld [vmem:[%s3 + $0xf8] sm:$0xff]
  %v595 = vld [vmem:[%s4] sm:$0x1]
  %v597 = vperm.slane %v595, 0
  %599 = vmatpush.msra.mxu0 %v578
  %600 = vmatpush.msra.mxu0 %v577
  %601 = vmatpush.msra.mxu0 %v576
  %602 = vmatpush.msra.mxu0 %v575
  %603 = vmatpush.msra.mxu0 %v574
  %604 = vmatpush.msra.mxu0 %v573
  %605 = vmatpush.msra.mxu0 %v572
  %606 = vmatpush.msra.mxu0 %v571
  %607 = vmatpush.msra.mxu0 %v570
  %608 = vmatpush.msra.mxu0 %v569
  %609 = vmatpush.msra.mxu0 %v568
  %610 = vmatpush.msra.mxu0 %v567
  %611 = vmatpush.msra.mxu0 %v566
  %612 = vmatpush.msra.mxu0 %v565
  %613 = vmatpush.msra.mxu0 %v564
  %614 = vmatpush.msra.mxu0 %v563
  %615 = vmatmul.f32.gmra.mxu0 %v547
  %v616 = vpop.f32.mrf.mxu0
  %v617 = vadd.f32 %v597, %v616
  %618 = vdwg.mxu0
  %619 = vmatpush.msra.mxu0 %v594
  %620 = vmatpush.msra.mxu0 %v593
  %621 = vmatpush.msra.mxu0 %v592
  %622 = vmatpush.msra.mxu0 %v591
  %623 = vmatpush.msra.mxu0 %v590
  %624 = vmatpush.msra.mxu0 %v589
  %625 = vmatpush.msra.mxu0 %v588
  %626 = vmatpush.msra.mxu0 %v587
  %627 = vmatpush.msra.mxu0 %v586
  %628 = vmatpush.msra.mxu0 %v585
  %629 = vmatpush.msra.mxu0 %v584
  %630 = vmatpush.msra.mxu0 %v583
  %631 = vmatpush.msra.mxu0 %v582
  %632 = vmatpush.msra.mxu0 %v581
  %633 = vmatpush.msra.mxu0 %v580
  %634 = vmatpush.msra.mxu0 %v579
  %635 = vmatmul.f32.gmra.mxu0 %v562
  %v636 = vpop.f32.mrf.mxu0
  %v637 = vadd.f32 %v617, %v636
  %638 = vdwg.mxu0
  %v639 = vxor.u32 %v637, 2147483648
  %v640 = vmul.f32 %v639, 1.442695
  %v641 = vpow.pop %v640
  %v642 = vadd.f32 %v641, 1.0
  %v643 = vrcp.pop %v642
  %v644 = vmul.f32 %v642, %v643
  %v645 = vsub.f32 1.0, %v644
  %v646 = vmul.f32 %v643, %v645
  %v647 = vadd.f32 %v643, %v646
  %vm648 = vweird.f32 %v642
  %vm649 = vweird.f32 %v643
  %vm650 = vmor %vm648, %vm649
  %v651 = vsel %vm650, %v643, %v647
  %v652 = vand.u32 2147483647, %v642
  %vm653 = vcmp.eq.f32.partialorder %v652, 8.507059e+37
  %v654 = vand.u32 %v642, 2147483648
  %v655 = vor.u32 1.1754944e-38, %v654
  %v656 = vsel %vm653, %v655, %v651
  %v657 = vmul.f32 1.0, %v656
  %v658 = vld [vmem:[%s5] sm:$0xff]
  %v659 = vld [vmem:[%s5 + $0x8] sm:$0xff]
  %v660 = vld [vmem:[%s5 + $0x10] sm:$0xff]
  %v661 = vld [vmem:[%s5 + $0x18] sm:$0xff]
  %v662 = vld [vmem:[%s5 + $0x20] sm:$0xff]
  %v663 = vld [vmem:[%s5 + $0x28] sm:$0xff]
  %v664 = vld [vmem:[%s5 + $0x30] sm:$0xff]
  %v665 = vld [vmem:[%s5 + $0x38] sm:$0xff]
  %v666 = vld [vmem:[%s5 + $0x40] sm:$0xff]
  %v667 = vld [vmem:[%s5 + $0x48] sm:$0xff]
  %v668 = vld [vmem:[%s5 + $0x50] sm:$0xff]
  %v669 = vld [vmem:[%s5 + $0x58] sm:$0xff]
  %v670 = vld [vmem:[%s5 + $0x60] sm:$0xff]
  %v671 = vld [vmem:[%s5 + $0x68] sm:$0xff]
  %v672 = vld [vmem:[%s5 + $0x70] sm:$0xff]
  %v673 = vld [vmem:[%s5 + $0x78] sm:$0xff]
  %v674 = vld [vmem:[%s5 + $0x80] sm:$0xff]
  %v675 = vld [vmem:[%s5 + $0x88] sm:$0xff]
  %v676 = vld [vmem:[%s5 + $0x90] sm:$0xff]
  %v677 = vld [vmem:[%s5 + $0x98] sm:$0xff]
  %v678 = vld [vmem:[%s5 + $0xa0] sm:$0xff]
  %v679 = vld [vmem:[%s5 + $0xa8] sm:$0xff]
  %v680 = vld [vmem:[%s5 + $0xb0] sm:$0xff]
  %v681 = vld [vmem:[%s5 + $0xb8] sm:$0xff]
  %v682 = vld [vmem:[%s5 + $0xc0] sm:$0xff]
  %v683 = vld [vmem:[%s5 + $0xc8] sm:$0xff]
  %v684 = vld [vmem:[%s5 + $0xd0] sm:$0xff]
  %v685 = vld [vmem:[%s5 + $0xd8] sm:$0xff]
  %v686 = vld [vmem:[%s5 + $0xe0] sm:$0xff]
  %v687 = vld [vmem:[%s5 + $0xe8] sm:$0xff]
  %v688 = vld [vmem:[%s5 + $0xf0] sm:$0xff]
  %v689 = vld [vmem:[%s5 + $0xf8] sm:$0xff]
  %v690 = vld [vmem:[%s6] sm:$0x3]
  %v692 = vperm.slane %v690, 0
  %v693 = vperm.slane %v690, 1
  %696 = vmatpush.msra.mxu0 %v688
  %697 = vmatpush.msra.mxu0 %v686
  %698 = vmatpush.msra.mxu0 %v684
  %699 = vmatpush.msra.mxu0 %v682
  %700 = vmatpush.msra.mxu0 %v680
  %701 = vmatpush.msra.mxu0 %v678
  %702 = vmatpush.msra.mxu0 %v676
  %703 = vmatpush.msra.mxu0 %v674
  %704 = vmatpush.msra.mxu0 %v672
  %705 = vmatpush.msra.mxu0 %v670
  %706 = vmatpush.msra.mxu0 %v668
  %707 = vmatpush.msra.mxu0 %v666
  %708 = vmatpush.msra.mxu0 %v664
  %709 = vmatpush.msra.mxu0 %v662
  %710 = vmatpush.msra.mxu0 %v660
  %711 = vmatpush.msra.mxu0 %v658
  %712 = vmatmul.f32.gmra.mxu0 %v657
  %v713 = vpop.f32.mrf.mxu0
  %v714 = vadd.f32 %v692, %v713
  %715 = vdwg.mxu0
  %716 = vmatpush.msra.mxu0 %v689
  %717 = vmatpush.msra.mxu0 %v687
  %718 = vmatpush.msra.mxu0 %v685
  %719 = vmatpush.msra.mxu0 %v683
  %720 = vmatpush.msra.mxu0 %v681
  %721 = vmatpush.msra.mxu0 %v679
  %722 = vmatpush.msra.mxu0 %v677
  %723 = vmatpush.msra.mxu0 %v675
  %724 = vmatpush.msra.mxu0 %v673
  %725 = vmatpush.msra.mxu0 %v671
  %726 = vmatpush.msra.mxu0 %v669
  %727 = vmatpush.msra.mxu0 %v667
  %728 = vmatpush.msra.mxu0 %v665
  %729 = vmatpush.msra.mxu0 %v663
  %730 = vmatpush.msra.mxu0 %v661
  %731 = vmatpush.msra.mxu0 %v659
  %732 = vmatmul.f32.gmra.mxu0 %v657
  %v733 = vpop.f32.mrf.mxu0
  %v734 = vadd.f32 %v693, %v733
  %735 = vdwg.mxu0
  %v736 = vxor.u32 %v714, 2147483648
  %v737 = vxor.u32 %v734, 2147483648
  %v738 = vmul.f32 %v736, 1.442695
  %v739 = vpow.pop %v738
  %v740 = vmul.f32 %v737, 1.442695
  %v741 = vpow.pop %v740
  %v742 = vadd.f32 %v739, 1.0
  %v743 = vadd.f32 %v741, 1.0
  %v744 = vrcp.pop %v742
  %v745 = vmul.f32 %v742, %v744
  %v746 = vsub.f32 1.0, %v745
  %v747 = vmul.f32 %v744, %v746
  %v748 = vadd.f32 %v744, %v747
  %vm749 = vweird.f32 %v742
  %vm750 = vweird.f32 %v744
  %vm751 = vmor %vm749, %vm750
  %v752 = vsel %vm751, %v744, %v748
  %v753 = vand.u32 2147483647, %v742
  %vm754 = vcmp.eq.f32.partialorder %v753, 8.507059e+37
  %v755 = vand.u32 %v742, 2147483648
  %v756 = vor.u32 1.1754944e-38, %v755
  %v757 = vsel %vm754, %v756, %v752
  %v758 = vmul.f32 1.0, %v757
  %v759 = vrcp.pop %v743
  %v760 = vmul.f32 %v743, %v759
  %v761 = vsub.f32 1.0, %v760
  %v762 = vmul.f32 %v759, %v761
  %v763 = vadd.f32 %v759, %v762
  %vm764 = vweird.f32 %v743
  %vm765 = vweird.f32 %v759
  %vm766 = vmor %vm764, %vm765
  %v767 = vsel %vm766, %v759, %v763
  %v768 = vand.u32 2147483647, %v743
  %vm769 = vcmp.eq.f32.partialorder %v768, 8.507059e+37
  %v770 = vand.u32 %v743, 2147483648
  %v771 = vor.u32 1.1754944e-38, %v770
  %v772 = vsel %vm769, %v771, %v767
  %v773 = vmul.f32 1.0, %v772
  %v774 = vld [vmem:[%s7] sm:$0xff]
  %v775 = vld [vmem:[%s7 + $0x8] sm:$0xff]
  %v776 = vld [vmem:[%s7 + $0x10] sm:$0xff]
  %v777 = vld [vmem:[%s7 + $0x18] sm:$0xff]
  %v778 = vld [vmem:[%s7 + $0x20] sm:$0xff]
  %v779 = vld [vmem:[%s7 + $0x28] sm:$0xff]
  %v780 = vld [vmem:[%s7 + $0x30] sm:$0xff]
  %v781 = vld [vmem:[%s7 + $0x38] sm:$0xff]
  %v782 = vld [vmem:[%s7 + $0x40] sm:$0xff]
  %v783 = vld [vmem:[%s7 + $0x48] sm:$0xff]
  %v784 = vld [vmem:[%s7 + $0x50] sm:$0xff]
  %v785 = vld [vmem:[%s7 + $0x58] sm:$0xff]
  %v786 = vld [vmem:[%s7 + $0x60] sm:$0xff]
  %v787 = vld [vmem:[%s7 + $0x68] sm:$0xff]
  %v788 = vld [vmem:[%s7 + $0x70] sm:$0xff]
  %v789 = vld [vmem:[%s7 + $0x78] sm:$0xff]
  %v790 = vld [vmem:[%s7 + $0x80] sm:$0xff]
  %v791 = vld [vmem:[%s7 + $0x88] sm:$0xff]
  %v792 = vld [vmem:[%s7 + $0x90] sm:$0xff]
  %v793 = vld [vmem:[%s7 + $0x98] sm:$0xff]
  %v794 = vld [vmem:[%s7 + $0xa0] sm:$0xff]
  %v795 = vld [vmem:[%s7 + $0xa8] sm:$0xff]
  %v796 = vld [vmem:[%s7 + $0xb0] sm:$0xff]
  %v797 = vld [vmem:[%s7 + $0xb8] sm:$0xff]
  %v798 = vld [vmem:[%s7 + $0xc0] sm:$0xff]
  %v799 = vld [vmem:[%s7 + $0xc8] sm:$0xff]
  %v800 = vld [vmem:[%s7 + $0xd0] sm:$0xff]
  %v801 = vld [vmem:[%s7 + $0xd8] sm:$0xff]
  %v802 = vld [vmem:[%s7 + $0xe0] sm:$0xff]
  %v803 = vld [vmem:[%s7 + $0xe8] sm:$0xff]
  %v804 = vld [vmem:[%s7 + $0xf0] sm:$0xff]
  %v805 = vld [vmem:[%s7 + $0xf8] sm:$0xff]
  %v806 = vld [vmem:[%s7 + $0x100] sm:$0xff]
  %v807 = vld [vmem:[%s7 + $0x108] sm:$0xff]
  %v808 = vld [vmem:[%s7 + $0x110] sm:$0xff]
  %v809 = vld [vmem:[%s7 + $0x118] sm:$0xff]
  %v810 = vld [vmem:[%s7 + $0x120] sm:$0xff]
  %v811 = vld [vmem:[%s7 + $0x128] sm:$0xff]
  %v812 = vld [vmem:[%s7 + $0x130] sm:$0xff]
  %v813 = vld [vmem:[%s7 + $0x138] sm:$0xff]
  %v814 = vld [vmem:[%s7 + $0x140] sm:$0xff]
  %v815 = vld [vmem:[%s7 + $0x148] sm:$0xff]
  %v816 = vld [vmem:[%s7 + $0x150] sm:$0xff]
  %v817 = vld [vmem:[%s7 + $0x158] sm:$0xff]
  %v818 = vld [vmem:[%s7 + $0x160] sm:$0xff]
  %v819 = vld [vmem:[%s7 + $0x168] sm:$0xff]
  %v820 = vld [vmem:[%s7 + $0x170] sm:$0xff]
  %v821 = vld [vmem:[%s7 + $0x178] sm:$0xff]
  %v822 = vld [vmem:[%s7 + $0x180] sm:$0xff]
  %v823 = vld [vmem:[%s7 + $0x188] sm:$0xff]
  %v824 = vld [vmem:[%s7 + $0x190] sm:$0xff]
  %v825 = vld [vmem:[%s7 + $0x198] sm:$0xff]
  %v826 = vld [vmem:[%s7 + $0x1a0] sm:$0xff]
  %v827 = vld [vmem:[%s7 + $0x1a8] sm:$0xff]
  %v828 = vld [vmem:[%s7 + $0x1b0] sm:$0xff]
  %v829 = vld [vmem:[%s7 + $0x1b8] sm:$0xff]
  %v830 = vld [vmem:[%s7 + $0x1c0] sm:$0xff]
  %v831 = vld [vmem:[%s7 + $0x1c8] sm:$0xff]
  %v832 = vld [vmem:[%s7 + $0x1d0] sm:$0xff]
  %v833 = vld [vmem:[%s7 + $0x1d8] sm:$0xff]
  %v834 = vld [vmem:[%s7 + $0x1e0] sm:$0xff]
  %v835 = vld [vmem:[%s7 + $0x1e8] sm:$0xff]
  %v836 = vld [vmem:[%s7 + $0x1f0] sm:$0xff]
  %v837 = vld [vmem:[%s7 + $0x1f8] sm:$0xff]
  %v838 = vld [vmem:[%s7 + $0x200] sm:$0xff]
  %v839 = vld [vmem:[%s7 + $0x208] sm:$0xff]
  %v840 = vld [vmem:[%s7 + $0x210] sm:$0xff]
  %v841 = vld [vmem:[%s7 + $0x218] sm:$0xff]
  %v842 = vld [vmem:[%s7 + $0x220] sm:$0xff]
  %v843 = vld [vmem:[%s7 + $0x228] sm:$0xff]
  %v844 = vld [vmem:[%s7 + $0x230] sm:$0xff]
  %v845 = vld [vmem:[%s7 + $0x238] sm:$0xff]
  %v846 = vld [vmem:[%s7 + $0x240] sm:$0xff]
  %v847 = vld [vmem:[%s7 + $0x248] sm:$0xff]
  %v848 = vld [vmem:[%s7 + $0x250] sm:$0xff]
  %v849 = vld [vmem:[%s7 + $0x258] sm:$0xff]
  %v850 = vld [vmem:[%s7 + $0x260] sm:$0xff]
  %v851 = vld [vmem:[%s7 + $0x268] sm:$0xff]
  %v852 = vld [vmem:[%s7 + $0x270] sm:$0xff]
  %v853 = vld [vmem:[%s7 + $0x278] sm:$0xff]
  %v854 = vld [vmem:[%s7 + $0x280] sm:$0xff]
  %v855 = vld [vmem:[%s7 + $0x288] sm:$0xff]
  %v856 = vld [vmem:[%s7 + $0x290] sm:$0xff]
  %v857 = vld [vmem:[%s7 + $0x298] sm:$0xff]
  %v858 = vld [vmem:[%s7 + $0x2a0] sm:$0xff]
  %v859 = vld [vmem:[%s7 + $0x2a8] sm:$0xff]
  %v860 = vld [vmem:[%s7 + $0x2b0] sm:$0xff]
  %v861 = vld [vmem:[%s7 + $0x2b8] sm:$0xff]
  %v862 = vld [vmem:[%s7 + $0x2c0] sm:$0xff]
  %v863 = vld [vmem:[%s7 + $0x2c8] sm:$0xff]
  %v864 = vld [vmem:[%s7 + $0x2d0] sm:$0xff]
  %v865 = vld [vmem:[%s7 + $0x2d8] sm:$0xff]
  %v866 = vld [vmem:[%s7 + $0x2e0] sm:$0xff]
  %v867 = vld [vmem:[%s7 + $0x2e8] sm:$0xff]
  %v868 = vld [vmem:[%s7 + $0x2f0] sm:$0xff]
  %v869 = vld [vmem:[%s7 + $0x2f8] sm:$0xff]
  %v870 = vld [vmem:[%s7 + $0x300] sm:$0xff]
  %v871 = vld [vmem:[%s7 + $0x308] sm:$0xff]
  %v872 = vld [vmem:[%s7 + $0x310] sm:$0xff]
  %v873 = vld [vmem:[%s7 + $0x318] sm:$0xff]
  %v874 = vld [vmem:[%s7 + $0x320] sm:$0xff]
  %v875 = vld [vmem:[%s7 + $0x328] sm:$0xff]
  %v876 = vld [vmem:[%s7 + $0x330] sm:$0xff]
  %v877 = vld [vmem:[%s7 + $0x338] sm:$0xff]
  %v878 = vld [vmem:[%s7 + $0x340] sm:$0xff]
  %v879 = vld [vmem:[%s7 + $0x348] sm:$0xff]
  %v880 = vld [vmem:[%s7 + $0x350] sm:$0xff]
  %v881 = vld [vmem:[%s7 + $0x358] sm:$0xff]
  %v882 = vld [vmem:[%s7 + $0x360] sm:$0xff]
  %v883 = vld [vmem:[%s7 + $0x368] sm:$0xff]
  %v884 = vld [vmem:[%s7 + $0x370] sm:$0xff]
  %v885 = vld [vmem:[%s7 + $0x378] sm:$0xff]
  %v886 = vld [vmem:[%s7 + $0x380] sm:$0xff]
  %v887 = vld [vmem:[%s7 + $0x388] sm:$0xff]
  %v888 = vld [vmem:[%s7 + $0x390] sm:$0xff]
  %v889 = vld [vmem:[%s7 + $0x398] sm:$0xff]
  %v890 = vld [vmem:[%s7 + $0x3a0] sm:$0xff]
  %v891 = vld [vmem:[%s7 + $0x3a8] sm:$0xff]
  %v892 = vld [vmem:[%s7 + $0x3b0] sm:$0xff]
  %v893 = vld [vmem:[%s7 + $0x3b8] sm:$0xff]
  %v894 = vld [vmem:[%s7 + $0x3c0] sm:$0xff]
  %v895 = vld [vmem:[%s7 + $0x3c8] sm:$0xff]
  %v896 = vld [vmem:[%s7 + $0x3d0] sm:$0xff]
  %v897 = vld [vmem:[%s7 + $0x3d8] sm:$0xff]
  %v898 = vld [vmem:[%s7 + $0x3e0] sm:$0xff]
  %v899 = vld [vmem:[%s7 + $0x3e8] sm:$0xff]
  %v900 = vld [vmem:[%s7 + $0x3f0] sm:$0xff]
  %v901 = vld [vmem:[%s7 + $0x3f8] sm:$0xff]
  %v902 = vld [vmem:[%s7 + $0x400] sm:$0xff]
  %v903 = vld [vmem:[%s7 + $0x408] sm:$0xff]
  %v904 = vld [vmem:[%s7 + $0x410] sm:$0xff]
  %v905 = vld [vmem:[%s7 + $0x418] sm:$0xff]
  %v906 = vld [vmem:[%s7 + $0x420] sm:$0xff]
  %v907 = vld [vmem:[%s7 + $0x428] sm:$0xff]
  %v908 = vld [vmem:[%s7 + $0x430] sm:$0xff]
  %v909 = vld [vmem:[%s7 + $0x438] sm:$0xff]
  %v910 = vld [vmem:[%s7 + $0x440] sm:$0xff]
  %v911 = vld [vmem:[%s7 + $0x448] sm:$0xff]
  %v912 = vld [vmem:[%s7 + $0x450] sm:$0xff]
  %v913 = vld [vmem:[%s7 + $0x458] sm:$0xff]
  %v914 = vld [vmem:[%s7 + $0x460] sm:$0xff]
  %v915 = vld [vmem:[%s7 + $0x468] sm:$0xff]
  %v916 = vld [vmem:[%s7 + $0x470] sm:$0xff]
  %v917 = vld [vmem:[%s7 + $0x478] sm:$0xff]
  %v918 = vld [vmem:[%s7 + $0x480] sm:$0xff]
  %v919 = vld [vmem:[%s7 + $0x488] sm:$0xff]
  %v920 = vld [vmem:[%s7 + $0x490] sm:$0xff]
  %v921 = vld [vmem:[%s7 + $0x498] sm:$0xff]
  %v922 = vld [vmem:[%s7 + $0x4a0] sm:$0xff]
  %v923 = vld [vmem:[%s7 + $0x4a8] sm:$0xff]
  %v924 = vld [vmem:[%s7 + $0x4b0] sm:$0xff]
  %v925 = vld [vmem:[%s7 + $0x4b8] sm:$0xff]
  %v926 = vld [vmem:[%s7 + $0x4c0] sm:$0xff]
  %v927 = vld [vmem:[%s7 + $0x4c8] sm:$0xff]
  %v928 = vld [vmem:[%s7 + $0x4d0] sm:$0xff]
  %v929 = vld [vmem:[%s7 + $0x4d8] sm:$0xff]
  %v930 = vld [vmem:[%s7 + $0x4e0] sm:$0xff]
  %v931 = vld [vmem:[%s7 + $0x4e8] sm:$0xff]
  %v932 = vld [vmem:[%s7 + $0x4f0] sm:$0xff]
  %v933 = vld [vmem:[%s7 + $0x4f8] sm:$0xff]
  %v934 = vld [vmem:[%s7 + $0x500] sm:$0xff]
  %v935 = vld [vmem:[%s7 + $0x508] sm:$0xff]
  %v936 = vld [vmem:[%s7 + $0x510] sm:$0xff]
  %v937 = vld [vmem:[%s7 + $0x518] sm:$0xff]
  %v938 = vld [vmem:[%s7 + $0x520] sm:$0xff]
  %v939 = vld [vmem:[%s7 + $0x528] sm:$0xff]
  %v940 = vld [vmem:[%s7 + $0x530] sm:$0xff]
  %v941 = vld [vmem:[%s7 + $0x538] sm:$0xff]
  %v942 = vld [vmem:[%s7 + $0x540] sm:$0xff]
  %v943 = vld [vmem:[%s7 + $0x548] sm:$0xff]
  %v944 = vld [vmem:[%s7 + $0x550] sm:$0xff]
  %v945 = vld [vmem:[%s7 + $0x558] sm:$0xff]
  %v946 = vld [vmem:[%s7 + $0x560] sm:$0xff]
  %v947 = vld [vmem:[%s7 + $0x568] sm:$0xff]
  %v948 = vld [vmem:[%s7 + $0x570] sm:$0xff]
  %v949 = vld [vmem:[%s7 + $0x578] sm:$0xff]
  %v950 = vld [vmem:[%s7 + $0x580] sm:$0xff]
  %v951 = vld [vmem:[%s7 + $0x588] sm:$0xff]
  %v952 = vld [vmem:[%s7 + $0x590] sm:$0xff]
  %v953 = vld [vmem:[%s7 + $0x598] sm:$0xff]
  %v954 = vld [vmem:[%s7 + $0x5a0] sm:$0xff]
  %v955 = vld [vmem:[%s7 + $0x5a8] sm:$0xff]
  %v956 = vld [vmem:[%s7 + $0x5b0] sm:$0xff]
  %v957 = vld [vmem:[%s7 + $0x5b8] sm:$0xff]
  %v958 = vld [vmem:[%s7 + $0x5c0] sm:$0xff]
  %v959 = vld [vmem:[%s7 + $0x5c8] sm:$0xff]
  %v960 = vld [vmem:[%s7 + $0x5d0] sm:$0xff]
  %v961 = vld [vmem:[%s7 + $0x5d8] sm:$0xff]
  %v962 = vld [vmem:[%s7 + $0x5e0] sm:$0xff]
  %v963 = vld [vmem:[%s7 + $0x5e8] sm:$0xff]
  %v964 = vld [vmem:[%s7 + $0x5f0] sm:$0xff]
  %v965 = vld [vmem:[%s7 + $0x5f8] sm:$0xff]
  %v966 = vld [vmem:[%s7 + $0x600] sm:$0xff]
  %v967 = vld [vmem:[%s7 + $0x608] sm:$0xff]
  %v968 = vld [vmem:[%s7 + $0x610] sm:$0xff]
  %v969 = vld [vmem:[%s7 + $0x618] sm:$0xff]
  %v970 = vld [vmem:[%s7 + $0x620] sm:$0xff]
  %v971 = vld [vmem:[%s7 + $0x628] sm:$0xff]
  %v972 = vld [vmem:[%s7 + $0x630] sm:$0xff]
  %v973 = vld [vmem:[%s7 + $0x638] sm:$0xff]
  %v974 = vld [vmem:[%s7 + $0x640] sm:$0xff]
  %v975 = vld [vmem:[%s7 + $0x648] sm:$0xff]
  %v976 = vld [vmem:[%s7 + $0x650] sm:$0xff]
  %v977 = vld [vmem:[%s7 + $0x658] sm:$0xff]
  %v978 = vld [vmem:[%s7 + $0x660] sm:$0xff]
  %v979 = vld [vmem:[%s7 + $0x668] sm:$0xff]
  %v980 = vld [vmem:[%s7 + $0x670] sm:$0xff]
  %v981 = vld [vmem:[%s7 + $0x678] sm:$0xff]
  %v982 = vld [vmem:[%s7 + $0x680] sm:$0xff]
  %v983 = vld [vmem:[%s7 + $0x688] sm:$0xff]
  %v984 = vld [vmem:[%s7 + $0x690] sm:$0xff]
  %v985 = vld [vmem:[%s7 + $0x698] sm:$0xff]
  %v986 = vld [vmem:[%s7 + $0x6a0] sm:$0xff]
  %v987 = vld [vmem:[%s7 + $0x6a8] sm:$0xff]
  %v988 = vld [vmem:[%s7 + $0x6b0] sm:$0xff]
  %v989 = vld [vmem:[%s7 + $0x6b8] sm:$0xff]
  %v990 = vld [vmem:[%s7 + $0x6c0] sm:$0xff]
  %v991 = vld [vmem:[%s7 + $0x6c8] sm:$0xff]
  %v992 = vld [vmem:[%s7 + $0x6d0] sm:$0xff]
  %v993 = vld [vmem:[%s7 + $0x6d8] sm:$0xff]
  %v994 = vld [vmem:[%s7 + $0x6e0] sm:$0xff]
  %v995 = vld [vmem:[%s7 + $0x6e8] sm:$0xff]
  %v996 = vld [vmem:[%s7 + $0x6f0] sm:$0xff]
  %v997 = vld [vmem:[%s7 + $0x6f8] sm:$0xff]
  %v998 = vld [vmem:[%s8] sm:$0x7f]
  %v1000 = vperm.slane %v998, 0
  %v1001 = vperm.slane %v998, 1
  %v1002 = vperm.slane %v998, 2
  %v1003 = vperm.slane %v998, 3
  %v1004 = vperm.slane %v998, 4
  %v1005 = vperm.slane %v998, 5
  %v1006 = vperm.slane %v998, 6
  %1014 = vmatpush.msra.mxu0 %v879
  %1015 = vmatpush.msra.mxu0 %v872
  %1016 = vmatpush.msra.mxu0 %v865
  %1017 = vmatpush.msra.mxu0 %v858
  %1018 = vmatpush.msra.mxu0 %v851
  %1019 = vmatpush.msra.mxu0 %v844
  %1020 = vmatpush.msra.mxu0 %v837
  %1021 = vmatpush.msra.mxu0 %v830
  %1022 = vmatpush.msra.mxu0 %v823
  %1023 = vmatpush.msra.mxu0 %v816
  %1024 = vmatpush.msra.mxu0 %v809
  %1025 = vmatpush.msra.mxu0 %v802
  %1026 = vmatpush.msra.mxu0 %v795
  %1027 = vmatpush.msra.mxu0 %v788
  %1028 = vmatpush.msra.mxu0 %v781
  %1029 = vmatpush.msra.mxu0 %v774
  %1030 = vmatmul.f32.gmra.mxu0 %v758
  %v1031 = vpop.f32.mrf.mxu0
  %v1032 = vadd.f32 %v1000, %v1031
  %1033 = vdwg.mxu0
  %1034 = vmatpush.msra.mxu0 %v991
  %1035 = vmatpush.msra.mxu0 %v984
  %1036 = vmatpush.msra.mxu0 %v977
  %1037 = vmatpush.msra.mxu0 %v970
  %1038 = vmatpush.msra.mxu0 %v963
  %1039 = vmatpush.msra.mxu0 %v956
  %1040 = vmatpush.msra.mxu0 %v949
  %1041 = vmatpush.msra.mxu0 %v942
  %1042 = vmatpush.msra.mxu0 %v935
  %1043 = vmatpush.msra.mxu0 %v928
  %1044 = vmatpush.msra.mxu0 %v921
  %1045 = vmatpush.msra.mxu0 %v914
  %1046 = vmatpush.msra.mxu0 %v907
  %1047 = vmatpush.msra.mxu0 %v900
  %1048 = vmatpush.msra.mxu0 %v893
  %1049 = vmatpush.msra.mxu0 %v886
  %1050 = vmatmul.f32.gmra.mxu0 %v773
  %v1051 = vpop.f32.mrf.mxu0
  %v1052 = vadd.f32 %v1032, %v1051
  %1053 = vdwg.mxu0
  %1054 = vmatpush.msra.mxu0 %v880
  %1055 = vmatpush.msra.mxu0 %v873
  %1056 = vmatpush.msra.mxu0 %v866
  %1057 = vmatpush.msra.mxu0 %v859
  %1058 = vmatpush.msra.mxu0 %v852
  %1059 = vmatpush.msra.mxu0 %v845
  %1060 = vmatpush.msra.mxu0 %v838
  %1061 = vmatpush.msra.mxu0 %v831
  %1062 = vmatpush.msra.mxu0 %v824
  %1063 = vmatpush.msra.mxu0 %v817
  %1064 = vmatpush.msra.mxu0 %v810
  %1065 = vmatpush.msra.mxu0 %v803
  %1066 = vmatpush.msra.mxu0 %v796
  %1067 = vmatpush.msra.mxu0 %v789
  %1068 = vmatpush.msra.mxu0 %v782
  %1069 = vmatpush.msra.mxu0 %v775
  %1070 = vmatmul.f32.gmra.mxu0 %v758
  %v1071 = vpop.f32.mrf.mxu0
  %v1072 = vadd.f32 %v1001, %v1071
  %1073 = vdwg.mxu0
  %1074 = vmatpush.msra.mxu0 %v992
  %1075 = vmatpush.msra.mxu0 %v985
  %1076 = vmatpush.msra.mxu0 %v978
  %1077 = vmatpush.msra.mxu0 %v971
  %1078 = vmatpush.msra.mxu0 %v964
  %1079 = vmatpush.msra.mxu0 %v957
  %1080 = vmatpush.msra.mxu0 %v950
  %1081 = vmatpush.msra.mxu0 %v943
  %1082 = vmatpush.msra.mxu0 %v936
  %1083 = vmatpush.msra.mxu0 %v929
  %1084 = vmatpush.msra.mxu0 %v922
  %1085 = vmatpush.msra.mxu0 %v915
  %1086 = vmatpush.msra.mxu0 %v908
  %1087 = vmatpush.msra.mxu0 %v901
  %1088 = vmatpush.msra.mxu0 %v894
  %1089 = vmatpush.msra.mxu0 %v887
  %1090 = vmatmul.f32.gmra.mxu0 %v773
  %v1091 = vpop.f32.mrf.mxu0
  %v1092 = vadd.f32 %v1072, %v1091
  %1093 = vdwg.mxu0
  %1094 = vmatpush.msra.mxu0 %v881
  %1095 = vmatpush.msra.mxu0 %v874
  %1096 = vmatpush.msra.mxu0 %v867
  %1097 = vmatpush.msra.mxu0 %v860
  %1098 = vmatpush.msra.mxu0 %v853
  %1099 = vmatpush.msra.mxu0 %v846
  %1100 = vmatpush.msra.mxu0 %v839
  %1101 = vmatpush.msra.mxu0 %v832
  %1102 = vmatpush.msra.mxu0 %v825
  %1103 = vmatpush.msra.mxu0 %v818
  %1104 = vmatpush.msra.mxu0 %v811
  %1105 = vmatpush.msra.mxu0 %v804
  %1106 = vmatpush.msra.mxu0 %v797
  %1107 = vmatpush.msra.mxu0 %v790
  %1108 = vmatpush.msra.mxu0 %v783
  %1109 = vmatpush.msra.mxu0 %v776
  %1110 = vmatmul.f32.gmra.mxu0 %v758
  %v1111 = vpop.f32.mrf.mxu0
  %v1112 = vadd.f32 %v1002, %v1111
  %1113 = vdwg.mxu0
  %1114 = vmatpush.msra.mxu0 %v993
  %1115 = vmatpush.msra.mxu0 %v986
  %1116 = vmatpush.msra.mxu0 %v979
  %1117 = vmatpush.msra.mxu0 %v972
  %1118 = vmatpush.msra.mxu0 %v965
  %1119 = vmatpush.msra.mxu0 %v958
  %1120 = vmatpush.msra.mxu0 %v951
  %1121 = vmatpush.msra.mxu0 %v944
  %1122 = vmatpush.msra.mxu0 %v937
  %1123 = vmatpush.msra.mxu0 %v930
  %1124 = vmatpush.msra.mxu0 %v923
  %1125 = vmatpush.msra.mxu0 %v916
  %1126 = vmatpush.msra.mxu0 %v909
  %1127 = vmatpush.msra.mxu0 %v902
  %1128 = vmatpush.msra.mxu0 %v895
  %1129 = vmatpush.msra.mxu0 %v888
  %1130 = vmatmul.f32.gmra.mxu0 %v773
  %v1131 = vpop.f32.mrf.mxu0
  %v1132 = vadd.f32 %v1112, %v1131
  %1133 = vdwg.mxu0
  %1134 = vmatpush.msra.mxu0 %v882
  %1135 = vmatpush.msra.mxu0 %v875
  %1136 = vmatpush.msra.mxu0 %v868
  %1137 = vmatpush.msra.mxu0 %v861
  %1138 = vmatpush.msra.mxu0 %v854
  %1139 = vmatpush.msra.mxu0 %v847
  %1140 = vmatpush.msra.mxu0 %v840
  %1141 = vmatpush.msra.mxu0 %v833
  %1142 = vmatpush.msra.mxu0 %v826
  %1143 = vmatpush.msra.mxu0 %v819
  %1144 = vmatpush.msra.mxu0 %v812
  %1145 = vmatpush.msra.mxu0 %v805
  %1146 = vmatpush.msra.mxu0 %v798
  %1147 = vmatpush.msra.mxu0 %v791
  %1148 = vmatpush.msra.mxu0 %v784
  %1149 = vmatpush.msra.mxu0 %v777
  %1150 = vmatmul.f32.gmra.mxu0 %v758
  %v1151 = vpop.f32.mrf.mxu0
  %v1152 = vadd.f32 %v1003, %v1151
  %1153 = vdwg.mxu0
  %1154 = vmatpush.msra.mxu0 %v994
  %1155 = vmatpush.msra.mxu0 %v987
  %1156 = vmatpush.msra.mxu0 %v980
  %1157 = vmatpush.msra.mxu0 %v973
  %1158 = vmatpush.msra.mxu0 %v966
  %1159 = vmatpush.msra.mxu0 %v959
  %1160 = vmatpush.msra.mxu0 %v952
  %1161 = vmatpush.msra.mxu0 %v945
  %1162 = vmatpush.msra.mxu0 %v938
  %1163 = vmatpush.msra.mxu0 %v931
  %1164 = vmatpush.msra.mxu0 %v924
  %1165 = vmatpush.msra.mxu0 %v917
  %1166 = vmatpush.msra.mxu0 %v910
  %1167 = vmatpush.msra.mxu0 %v903
  %1168 = vmatpush.msra.mxu0 %v896
  %1169 = vmatpush.msra.mxu0 %v889
  %1170 = vmatmul.f32.gmra.mxu0 %v773
  %v1171 = vpop.f32.mrf.mxu0
  %v1172 = vadd.f32 %v1152, %v1171
  %1173 = vdwg.mxu0
  %1174 = vmatpush.msra.mxu0 %v883
  %1175 = vmatpush.msra.mxu0 %v876
  %1176 = vmatpush.msra.mxu0 %v869
  %1177 = vmatpush.msra.mxu0 %v862
  %1178 = vmatpush.msra.mxu0 %v855
  %1179 = vmatpush.msra.mxu0 %v848
  %1180 = vmatpush.msra.mxu0 %v841
  %1181 = vmatpush.msra.mxu0 %v834
  %1182 = vmatpush.msra.mxu0 %v827
  %1183 = vmatpush.msra.mxu0 %v820
  %1184 = vmatpush.msra.mxu0 %v813
  %1185 = vmatpush.msra.mxu0 %v806
  %1186 = vmatpush.msra.mxu0 %v799
  %1187 = vmatpush.msra.mxu0 %v792
  %1188 = vmatpush.msra.mxu0 %v785
  %1189 = vmatpush.msra.mxu0 %v778
  %1190 = vmatmul.f32.gmra.mxu0 %v758
  %v1191 = vpop.f32.mrf.mxu0
  %v1192 = vadd.f32 %v1004, %v1191
  %1193 = vdwg.mxu0
  %1194 = vmatpush.msra.mxu0 %v995
  %1195 = vmatpush.msra.mxu0 %v988
  %1196 = vmatpush.msra.mxu0 %v981
  %1197 = vmatpush.msra.mxu0 %v974
  %1198 = vmatpush.msra.mxu0 %v967
  %1199 = vmatpush.msra.mxu0 %v960
  %1200 = vmatpush.msra.mxu0 %v953
  %1201 = vmatpush.msra.mxu0 %v946
  %1202 = vmatpush.msra.mxu0 %v939
  %1203 = vmatpush.msra.mxu0 %v932
  %1204 = vmatpush.msra.mxu0 %v925
  %1205 = vmatpush.msra.mxu0 %v918
  %1206 = vmatpush.msra.mxu0 %v911
  %1207 = vmatpush.msra.mxu0 %v904
  %1208 = vmatpush.msra.mxu0 %v897
  %1209 = vmatpush.msra.mxu0 %v890
  %1210 = vmatmul.f32.gmra.mxu0 %v773
  %v1211 = vpop.f32.mrf.mxu0
  %v1212 = vadd.f32 %v1192, %v1211
  %1213 = vdwg.mxu0
  %1214 = vmatpush.msra.mxu0 %v884
  %1215 = vmatpush.msra.mxu0 %v877
  %1216 = vmatpush.msra.mxu0 %v870
  %1217 = vmatpush.msra.mxu0 %v863
  %1218 = vmatpush.msra.mxu0 %v856
  %1219 = vmatpush.msra.mxu0 %v849
  %1220 = vmatpush.msra.mxu0 %v842
  %1221 = vmatpush.msra.mxu0 %v835
  %1222 = vmatpush.msra.mxu0 %v828
  %1223 = vmatpush.msra.mxu0 %v821
  %1224 = vmatpush.msra.mxu0 %v814
  %1225 = vmatpush.msra.mxu0 %v807
  %1226 = vmatpush.msra.mxu0 %v800
  %1227 = vmatpush.msra.mxu0 %v793
  %1228 = vmatpush.msra.mxu0 %v786
  %1229 = vmatpush.msra.mxu0 %v779
  %1230 = vmatmul.f32.gmra.mxu0 %v758
  %v1231 = vpop.f32.mrf.mxu0
  %v1232 = vadd.f32 %v1005, %v1231
  %1233 = vdwg.mxu0
  %1234 = vmatpush.msra.mxu0 %v996
  %1235 = vmatpush.msra.mxu0 %v989
  %1236 = vmatpush.msra.mxu0 %v982
  %1237 = vmatpush.msra.mxu0 %v975
  %1238 = vmatpush.msra.mxu0 %v968
  %1239 = vmatpush.msra.mxu0 %v961
  %1240 = vmatpush.msra.mxu0 %v954
  %1241 = vmatpush.msra.mxu0 %v947
  %1242 = vmatpush.msra.mxu0 %v940
  %1243 = vmatpush.msra.mxu0 %v933
  %1244 = vmatpush.msra.mxu0 %v926
  %1245 = vmatpush.msra.mxu0 %v919
  %1246 = vmatpush.msra.mxu0 %v912
  %1247 = vmatpush.msra.mxu0 %v905
  %1248 = vmatpush.msra.mxu0 %v898
  %1249 = vmatpush.msra.mxu0 %v891
  %1250 = vmatmul.f32.gmra.mxu0 %v773
  %v1251 = vpop.f32.mrf.mxu0
  %v1252 = vadd.f32 %v1232, %v1251
  %1253 = vdwg.mxu0
  %1254 = vmatpush.msra.mxu0 %v885
  %1255 = vmatpush.msra.mxu0 %v878
  %1256 = vmatpush.msra.mxu0 %v871
  %1257 = vmatpush.msra.mxu0 %v864
  %1258 = vmatpush.msra.mxu0 %v857
  %1259 = vmatpush.msra.mxu0 %v850
  %1260 = vmatpush.msra.mxu0 %v843
  %1261 = vmatpush.msra.mxu0 %v836
  %1262 = vmatpush.msra.mxu0 %v829
  %1263 = vmatpush.msra.mxu0 %v822
  %1264 = vmatpush.msra.mxu0 %v815
  %1265 = vmatpush.msra.mxu0 %v808
  %1266 = vmatpush.msra.mxu0 %v801
  %1267 = vmatpush.msra.mxu0 %v794
  %1268 = vmatpush.msra.mxu0 %v787
  %1269 = vmatpush.msra.mxu0 %v780
  %1270 = vmatmul.f32.gmra.mxu0 %v758
  %v1271 = vpop.f32.mrf.mxu0
  %v1272 = vadd.f32 %v1006, %v1271
  %1273 = vdwg.mxu0
  %1274 = vmatpush.msra.mxu0 %v997
  %1275 = vmatpush.msra.mxu0 %v990
  %1276 = vmatpush.msra.mxu0 %v983
  %1277 = vmatpush.msra.mxu0 %v976
  %1278 = vmatpush.msra.mxu0 %v969
  %1279 = vmatpush.msra.mxu0 %v962
  %1280 = vmatpush.msra.mxu0 %v955
  %1281 = vmatpush.msra.mxu0 %v948
  %1282 = vmatpush.msra.mxu0 %v941
  %1283 = vmatpush.msra.mxu0 %v934
  %1284 = vmatpush.msra.mxu0 %v927
  %1285 = vmatpush.msra.mxu0 %v920
  %1286 = vmatpush.msra.mxu0 %v913
  %1287 = vmatpush.msra.mxu0 %v906
  %1288 = vmatpush.msra.mxu0 %v899
  %1289 = vmatpush.msra.mxu0 %v892
  %1290 = vmatmul.f32.gmra.mxu0 %v773
  %v1291 = vpop.f32.mrf.mxu0
  %v1292 = vadd.f32 %v1272, %v1291
  %1293 = vdwg.mxu0
  %v1294 = vxor.u32 %v1052, 2147483648
  %v1295 = vxor.u32 %v1092, 2147483648
  %v1296 = vxor.u32 %v1132, 2147483648
  %v1297 = vxor.u32 %v1172, 2147483648
  %v1298 = vxor.u32 %v1212, 2147483648
  %v1299 = vxor.u32 %v1252, 2147483648
  %v1300 = vxor.u32 %v1292, 2147483648
  %v1301 = vmul.f32 %v1294, 1.442695
  %v1302 = vpow.pop %v1301
  %v1303 = vmul.f32 %v1295, 1.442695
  %v1304 = vpow.pop %v1303
  %v1305 = vmul.f32 %v1296, 1.442695
  %v1306 = vpow.pop %v1305
  %v1307 = vmul.f32 %v1297, 1.442695
  %v1308 = vpow.pop %v1307
  %v1309 = vmul.f32 %v1298, 1.442695
  %v1310 = vpow.pop %v1309
  %v1311 = vmul.f32 %v1299, 1.442695
  %v1312 = vpow.pop %v1311
  %v1313 = vmul.f32 %v1300, 1.442695
  %v1314 = vpow.pop %v1313
  %v1315 = vadd.f32 %v1302, 1.0
  %v1316 = vadd.f32 %v1304, 1.0
  %v1317 = vadd.f32 %v1306, 1.0
  %v1318 = vadd.f32 %v1308, 1.0
  %v1319 = vadd.f32 %v1310, 1.0
  %v1320 = vadd.f32 %v1312, 1.0
  %v1321 = vadd.f32 %v1314, 1.0
  %v1322 = vrcp.pop %v1315
  %v1323 = vmul.f32 %v1315, %v1322
  %v1324 = vsub.f32 1.0, %v1323
  %v1325 = vmul.f32 %v1322, %v1324
  %v1326 = vadd.f32 %v1322, %v1325
  %vm1327 = vweird.f32 %v1315
  %vm1328 = vweird.f32 %v1322
  %vm1329 = vmor %vm1327, %vm1328
  %v1330 = vsel %vm1329, %v1322, %v1326
  %v1331 = vand.u32 2147483647, %v1315
  %vm1332 = vcmp.eq.f32.partialorder %v1331, 8.507059e+37
  %v1333 = vand.u32 %v1315, 2147483648
  %v1334 = vor.u32 1.1754944e-38, %v1333
  %v1335 = vsel %vm1332, %v1334, %v1330
  %v1336 = vmul.f32 1.0, %v1335
  %v1337 = vrcp.pop %v1316
  %v1338 = vmul.f32 %v1316, %v1337
  %v1339 = vsub.f32 1.0, %v1338
  %v1340 = vmul.f32 %v1337, %v1339
  %v1341 = vadd.f32 %v1337, %v1340
  %vm1342 = vweird.f32 %v1316
  %vm1343 = vweird.f32 %v1337
  %vm1344 = vmor %vm1342, %vm1343
  %v1345 = vsel %vm1344, %v1337, %v1341
  %v1346 = vand.u32 2147483647, %v1316
  %vm1347 = vcmp.eq.f32.partialorder %v1346, 8.507059e+37
  %v1348 = vand.u32 %v1316, 2147483648
  %v1349 = vor.u32 1.1754944e-38, %v1348
  %v1350 = vsel %vm1347, %v1349, %v1345
  %v1351 = vmul.f32 1.0, %v1350
  %v1352 = vrcp.pop %v1317
  %v1353 = vmul.f32 %v1317, %v1352
  %v1354 = vsub.f32 1.0, %v1353
  %v1355 = vmul.f32 %v1352, %v1354
  %v1356 = vadd.f32 %v1352, %v1355
  %vm1357 = vweird.f32 %v1317
  %vm1358 = vweird.f32 %v1352
  %vm1359 = vmor %vm1357, %vm1358
  %v1360 = vsel %vm1359, %v1352, %v1356
  %v1361 = vand.u32 2147483647, %v1317
  %vm1362 = vcmp.eq.f32.partialorder %v1361, 8.507059e+37
  %v1363 = vand.u32 %v1317, 2147483648
  %v1364 = vor.u32 1.1754944e-38, %v1363
  %v1365 = vsel %vm1362, %v1364, %v1360
  %v1366 = vmul.f32 1.0, %v1365
  %v1367 = vrcp.pop %v1318
  %v1368 = vmul.f32 %v1318, %v1367
  %v1369 = vsub.f32 1.0, %v1368
  %v1370 = vmul.f32 %v1367, %v1369
  %v1371 = vadd.f32 %v1367, %v1370
  %vm1372 = vweird.f32 %v1318
  %vm1373 = vweird.f32 %v1367
  %vm1374 = vmor %vm1372, %vm1373
  %v1375 = vsel %vm1374, %v1367, %v1371
  %v1376 = vand.u32 2147483647, %v1318
  %vm1377 = vcmp.eq.f32.partialorder %v1376, 8.507059e+37
  %v1378 = vand.u32 %v1318, 2147483648
  %v1379 = vor.u32 1.1754944e-38, %v1378
  %v1380 = vsel %vm1377, %v1379, %v1375
  %v1381 = vmul.f32 1.0, %v1380
  %v1382 = vrcp.pop %v1319
  %v1383 = vmul.f32 %v1319, %v1382
  %v1384 = vsub.f32 1.0, %v1383
  %v1385 = vmul.f32 %v1382, %v1384
  %v1386 = vadd.f32 %v1382, %v1385
  %vm1387 = vweird.f32 %v1319
  %vm1388 = vweird.f32 %v1382
  %vm1389 = vmor %vm1387, %vm1388
  %v1390 = vsel %vm1389, %v1382, %v1386
  %v1391 = vand.u32 2147483647, %v1319
  %vm1392 = vcmp.eq.f32.partialorder %v1391, 8.507059e+37
  %v1393 = vand.u32 %v1319, 2147483648
  %v1394 = vor.u32 1.1754944e-38, %v1393
  %v1395 = vsel %vm1392, %v1394, %v1390
  %v1396 = vmul.f32 1.0, %v1395
  %v1397 = vrcp.pop %v1320
  %v1398 = vmul.f32 %v1320, %v1397
  %v1399 = vsub.f32 1.0, %v1398
  %v1400 = vmul.f32 %v1397, %v1399
  %v1401 = vadd.f32 %v1397, %v1400
  %vm1402 = vweird.f32 %v1320
  %vm1403 = vweird.f32 %v1397
  %vm1404 = vmor %vm1402, %vm1403
  %v1405 = vsel %vm1404, %v1397, %v1401
  %v1406 = vand.u32 2147483647, %v1320
  %vm1407 = vcmp.eq.f32.partialorder %v1406, 8.507059e+37
  %v1408 = vand.u32 %v1320, 2147483648
  %v1409 = vor.u32 1.1754944e-38, %v1408
  %v1410 = vsel %vm1407, %v1409, %v1405
  %v1411 = vmul.f32 1.0, %v1410
  %v1412 = vrcp.pop %v1321
  %v1413 = vmul.f32 %v1321, %v1412
  %v1414 = vsub.f32 1.0, %v1413
  %v1415 = vmul.f32 %v1412, %v1414
  %v1416 = vadd.f32 %v1412, %v1415
  %vm1417 = vweird.f32 %v1321
  %vm1418 = vweird.f32 %v1412
  %vm1419 = vmor %vm1417, %vm1418
  %v1420 = vsel %vm1419, %v1412, %v1416
  %v1421 = vand.u32 2147483647, %v1321
  %vm1422 = vcmp.eq.f32.partialorder %v1421, 8.507059e+37
  %v1423 = vand.u32 %v1321, 2147483648
  %v1424 = vor.u32 1.1754944e-38, %v1423
  %v1425 = vsel %vm1422, %v1424, %v1420
  %v1426 = vmul.f32 1.0, %v1425
  %1427 = vst [vmem:[%s9] sm:$0xff] %v1336
  %1428 = vst [vmem:[%s9 + $0x8] sm:$0xff] %v1351
  %1429 = vst [vmem:[%s9 + $0x10] sm:$0xff] %v1366
  %1430 = vst [vmem:[%s9 + $0x18] sm:$0xff] %v1381
  %1431 = vst [vmem:[%s9 + $0x20] sm:$0xff] %v1396
  %1432 = vst [vmem:[%s9 + $0x28] sm:$0xff] %v1411
  %1433 = vst.msk [vmem:[%s9 + $0x30] sm:$0xff] %vm241, %v1426
  // Predicated region
  $region38: #{autoencoder_forward.1} parent=0 // pred_check
    _
  $region39: #{autoencoder_forward.1} parent=0 // pred_check_branch
    %1435 = sbr.rel (0) target = $region41
  $region40: #{autoencoder_forward.1} parent=0 // pred_region
    _
  $region41: #{autoencoder_forward.1} parent=0 // pred_fallthru
    _
  // Predicated region
  $region42: #{autoencoder_forward.1} parent=0 // pred_check
    _
  $region43: #{autoencoder_forward.1} parent=0 // pred_check_branch
    %1437 = sbr.rel (0) target = $region45
  $region44: #{autoencoder_forward.1} parent=0 // pred_region
    _
  $region45: #{autoencoder_forward.1} parent=0 // pred_fallthru
    _

</llo_original>
